<compile_context>
chip_gen: v5e
topology: v5e:2x2
jax: 0.10.0
libtpu: 0.0.40
codegen_flags: <defaults>
</compile_context>

<pallas_src>
import numpy as np
import jax
import jax.numpy as jnp
from jax import lax
from jax.experimental import pallas as pl
from jax.experimental.pallas import tpu as pltpu

# ---------------------------------------------------------------------------
# Hyper-parameters:  input_dim = [E, T]  ->  LSTM(input_size=T, hidden_size=T)
#   EEGNet(chunk_size=T, num_electrodes=E, F1, F2, D, num_classes=NC, kernel_1=K1, kernel_2=K2)
# ---------------------------------------------------------------------------
B, E, T = 4, 8, 64
H = T                          # LSTM hidden size == input_dim[1]
F1, D, F2 = 4, 2, 8
F1D = F1 * D
K1, K2 = 16, 8
NC = 2
EPS = 1e-3                     # torcheeg BatchNorm eps

P1PAD = K1 // 2
T1P = T + 2 * P1PAD            # padded time for block-1 temporal conv (80)
W0 = T1P - K1 + 1              # width after conv1 (65)
W1 = (W0 - 4) // 4 + 1         # width after AvgPool2d((1,4), stride=4) (16)
P2PAD = K2 // 2
W1P = W1 + 2 * P2PAD           # 24
W1C = W1P - K2 + 1             # width after depthwise temporal conv (17)
W2 = (W1C - 8) // 8 + 1        # width after AvgPool2d((1,8), stride=8) (2)
FEAT = F2 * W2                 # flattened feature dim of the final Linear

BE = B * E                     # 32 rows (batch-stacked electrodes)
BJ = B * F1D                   # 32 rows (batch-stacked block-1 channels)
BF = B * F2                    # 32 rows (batch-stacked block-2 channels)


def _sigmoid_fast(x):
    # exp + approx reciprocal both land on the EUP slot (no full-precision divide).
    return pl.reciprocal(1.0 + jnp.exp(-x), approx=True)


def _elu(x):
    # Clamp the exp argument so the discarded positive branch cannot overflow.
    return jnp.where(x > 0, x, jnp.exp(jnp.minimum(x, 0.0)) - 1.0)


# ---------------------------------------------------------------------------
# Fused kernel: LSTM + wrapper Sigmoid + full EEGNet, single invocation (no grid).
# ---------------------------------------------------------------------------
def _fused_kernel(x_ref, wih_ref, whh_ref, b_ref,
                  w2blk_ref, wz_ref, bz_ref, p1_ref,
                  w3_ref, w4blk_ref, b3_ref, p2_ref,
                  lw_ref, sb_ref, out_ref):
    # ---- LSTM (seq axis = original batch B, "batch" axis = electrodes E) ----
    # Hoisted input projection for all timesteps: (B*E, T)bf16 @ (T, 4H)bf16 -> f32 acc.
    xproj = (jnp.dot(x_ref[...], wih_ref[...],
                     preferred_element_type=jnp.float32) + b_ref[...])
    whh = whh_ref[...]                                    # (H, 4H) bf16

    hs = []
    h = None
    c = None
    for t in range(B):                                    # unrolled serial recurrence
        if t == 0:
            gates = xproj[0:E, :]                         # h == 0: skip recurrent matmul
        else:
            gates = (xproj[t * E:(t + 1) * E, :]
                     + jnp.dot(h.astype(jnp.bfloat16), whh,
                               preferred_element_type=jnp.float32))   # (E, 4H)
        # gate columns pre-permuted to [i | f | o | g]: one wide sigmoid for 3 gates.
        sifo = _sigmoid_fast(gates[:, 0:3 * H])
        i_g = sifo[:, 0 * H:1 * H]
        f_g = sifo[:, 1 * H:2 * H]
        o_g = sifo[:, 2 * H:3 * H]
        g_g = jnp.tanh(gates[:, 3 * H:4 * H])
        c = i_g * g_g if t == 0 else f_g * c + i_g * g_g  # c_{-1} == 0
        h = o_g * jnp.tanh(c)
        hs.append(h)                                      # rows t*E..t*E+E-1 = EEGNet batch t

    # Wrapper Sigmoid hoisted out of the recurrence; Dropout(0.2) identity in eval mode.
    y = _sigmoid_fast(jnp.concatenate(hs, axis=0))        # (B*E, T) f32

    # ---- EEGNet block 1 (all B stacked on sublanes; BN1/BN2 folded on host) ----
    # Spatial depthwise (E,1) conv applied first (commutes with the temporal conv);
    # zero time-padding applied to its output (equivalent since W2 @ 0 == 0).
    u = jnp.dot(w2blk_ref[...], y.astype(jnp.bfloat16),
                preferred_element_type=jnp.float32)       # (BJ, T)
    zpad1 = jnp.zeros((BJ, P1PAD), jnp.float32)
    upad = jnp.concatenate([zpad1, u, zpad1], axis=1)     # (BJ, T1P), stays in vregs
    wz = wz_ref[...]                                      # (BJ, K1) folded temporal taps
    z = jnp.zeros((BJ, W0), jnp.float32)
    for k in range(K1):                                   # depthwise temporal conv (1,K1)
        z = z + wz[:, k:k + 1] * upad[:, k:k + W0]
    z = _elu(z + bz_ref[...])
    pooled = jnp.dot(z, p1_ref[...], preferred_element_type=jnp.float32)   # (BJ, W1)

    # ---- EEGNet block 2 -------------------------------------------------------
    zpad2 = jnp.zeros((BJ, P2PAD), jnp.float32)
    pad2 = jnp.concatenate([zpad2, pooled, zpad2], axis=1)  # (BJ, W1P), in vregs
    w3 = w3_ref[...]                                      # (BJ, K2)
    a3 = jnp.zeros((BJ, W1C), jnp.float32)
    for k in range(K2):                                   # depthwise (1, K2)
        a3 = a3 + w3[:, k:k + 1] * pad2[:, k:k + W1C]
    # pointwise conv F1*D -> F2 (BN3 scale folded) + BN3 bias + ELU
    a4 = _elu(jnp.dot(w4blk_ref[...], a3, preferred_element_type=jnp.float32)
              + b3_ref[...])                              # (BF, W1C)
    feat = jnp.dot(a4, p2_ref[...], preferred_element_type=jnp.float32)    # (BF, W2)

    # ---- flatten (C-order) + Linear(FEAT, NC, bias=False) ---------------------
    lw = lw_ref[...]                                      # (BF, W2*NC)
    cols = jnp.zeros((BF, NC), jnp.float32)
    for w in range(W2):
        cols = cols + feat[:, w:w + 1] * lw[:, w * NC:(w + 1) * NC]        # (BF, NC)
    out_ref[...] = jnp.dot(sb_ref[...], cols, preferred_element_type=jnp.float32)  # (B, NC)


def lstm_encoder_eegnet_forward(x, params):
    # x: (B, 1, E, T), NCHW with a singleton channel (mirrors x.unsqueeze(1))
    xflat = x[:, 0, :, :].reshape(BE, T).astype(jnp.bfloat16)   # squeeze(1), stack B*E rows
    vmem = pl.BlockSpec(memory_space=pltpu.MemorySpace.VMEM)    # whole-array, no pipelining
    return pl.pallas_call(
        _fused_kernel,
        out_shape=jax.ShapeDtypeStruct((B, NC), jnp.float32),
        in_specs=[vmem] * 14,
        out_specs=vmem,
    )(xflat, params["wih_cat"], params["whh_cat"], params["b_cat"],
      params["w2blk"], params["wz2"], params["bz_t"], params["p1"],
      params["w3_2"], params["w4blk"], params["b3_t"], params["p2"],
      params["lw2"], params["sb"])


# ---------------------------------------------------------------------------
# Deterministic parameter construction (synthetic, no checkpoint loading)
# ---------------------------------------------------------------------------
def pool_matrix(win, kernel, stride):
    wout = (win - kernel) // stride + 1
    m = np.zeros((win, wout), np.float32)
    for j in range(wout):
        m[j * stride:j * stride + kernel, j] = 1.0 / kernel
    return m


def init_params(key):
    ks = jax.random.split(key, 24)

    def u(k, shape, s):
        return jax.random.uniform(k, shape, jnp.float32, -s, s)

    # --- LSTM(input_size=T, hidden_size=T), PyTorch weight layout (gates i|f|g|o) ---
    lim = 1.0 / float(H) ** 0.5
    w_ih = u(ks[0], (4 * H, T), lim)
    w_hh = u(ks[1], (4 * H, H), lim)
    b_ih = u(ks[2], (4 * H,), lim)
    b_hh = u(ks[3], (4 * H,), lim)

    # --- EEGNet ---
    w1 = u(ks[4], (F1, K1), 0.4)                        # Conv2d(1,F1,(1,K1)), no bias
    g1, be1 = 1.0 + u(ks[5], (F1,), 0.2), u(ks[6], (F1,), 0.2)
    m1, v1 = u(ks[7], (F1,), 0.2), 1.0 + u(ks[8], (F1,), 0.4)

    w2 = u(ks[9], (F1D, E), 0.5)                        # Conv2dWithConstraint (E,1), groups=F1
    n2 = jnp.sqrt(jnp.sum(w2 * w2, axis=1, keepdims=True))
    w2 = w2 * jnp.where(n2 > 1.0, 1.0 / (n2 + 1e-7), 1.0)   # max_norm=1 renorm
    g2, be2 = 1.0 + u(ks[10], (F1D,), 0.2), u(ks[11], (F1D,), 0.2)
    m2, v2 = u(ks[12], (F1D,), 0.2), 1.0 + u(ks[13], (F1D,), 0.4)

    w3 = u(ks[14], (F1D, K2), 0.4)                      # depthwise temporal conv
    w4 = u(ks[15], (F2, F1D), 0.4)                      # pointwise conv
    g3, be3 = 1.0 + u(ks[16], (F2,), 0.2), u(ks[17], (F2,), 0.2)
    m3, v3 = u(ks[18], (F2,), 0.2), 1.0 + u(ks[19], (F2,), 0.4)

    lin = u(ks[20], (NC, FEAT), 0.4)                    # Linear(FEAT, NC, bias=False)

    def fold(g, b, m, v):                               # eval-mode BatchNorm folding
        s = g / jnp.sqrt(v + EPS)
        return s, b - m * s

    s1, bb1 = fold(g1, be1, m1, v1)
    s2, bb2 = fold(g2, be2, m2, v2)
    s3, bb3 = fold(g3, be3, m3, v3)

    # ------------------- kernel-side packing (numpy) -------------------------
    # gate-column permutation i|f|g|o -> i|f|o|g (one wide sigmoid in-kernel)
    perm = np.concatenate([np.arange(0, 2 * H), np.arange(3 * H, 4 * H),
                           np.arange(2 * H, 3 * H)])
    w_ih_n, w_hh_n = np.asarray(w_ih), np.asarray(w_hh)
    wih_cat = np.ascontiguousarray(w_ih_n.T[:, perm])    # (T, 4H)
    whh_cat = np.ascontiguousarray(w_hh_n.T[:, perm])    # (H, 4H)
    b_cat = (np.asarray(b_ih) + np.asarray(b_hh))[perm][None, :]

    w1n, s1n, bb1n = np.asarray(w1), np.asarray(s1), np.asarray(bb1)
    w2n, s2n, bb2n = np.asarray(w2), np.asarray(s2), np.asarray(bb2)
    w3n, w4n = np.asarray(w3), np.asarray(w4)
    s3n, bb3n = np.asarray(s3), np.asarray(bb3)
    linn = np.asarray(lin)

    p1n = pool_matrix(W0, 4, 4)                         # (W0, W1)
    p2n = pool_matrix(W1C, 8, 8)                        # (W1C, W2)

    grp = np.arange(F1D) // D
    # temporal taps with BN1 + BN2 scales folded: wz[j,k] = s2[j]*s1[j//D]*w1[j//D,k]
    wz = s2n[:, None] * s1n[grp, None] * w1n[grp, :]    # (F1D, K1)
    s2w = w2n.sum(axis=1)                               # sum_e w2[j,e]
    bz = s2n * bb1n[grp] * s2w + bb2n                   # folded block-1 bias (F1D,)
    w4s = s3n[:, None] * w4n                            # BN3 scale folded into pointwise
    lin3 = linn.reshape(NC, F2, W2)
    lwrow = np.transpose(lin3, (1, 2, 0)).reshape(F2, W2 * NC)   # (F2, W2*NC)

    w2blk = np.zeros((BJ, BE), np.float32)              # block-diag spatial depthwise conv
    w4blk = np.zeros((BF, BJ), np.float32)              # block-diag pointwise conv
    sb = np.zeros((B, BF), np.float32)                  # per-batch row-sum selector
    for bb in range(B):
        w2blk[bb * F1D:(bb + 1) * F1D, bb * E:(bb + 1) * E] = w2n
        w4blk[bb * F2:(bb + 1) * F2, bb * F1D:(bb + 1) * F1D] = w4s
        sb[bb, bb * F2:(bb + 1) * F2] = 1.0

    # lane-contiguous 2-D slabs (no (K,32,1) tile blowup)
    wz2 = np.tile(wz, (B, 1)).astype(np.float32)              # (BJ, K1)
    bz_t = np.tile(bz[:, None], (B, 1)).astype(np.float32)    # (BJ, 1)
    w3_2 = np.tile(w3n, (B, 1)).astype(np.float32)            # (BJ, K2)
    b3_t = np.tile(bb3n[:, None], (B, 1)).astype(np.float32)  # (BF, 1)
    lw2 = np.tile(lwrow, (B, 1)).astype(np.float32)           # (BF, W2*NC)

    params = dict(
        wih_cat=jnp.asarray(wih_cat, jnp.bfloat16),     # bf16 MXU operands
        whh_cat=jnp.asarray(whh_cat, jnp.bfloat16),
        b_cat=jnp.asarray(b_cat, jnp.float32),
        w2blk=jnp.asarray(w2blk, jnp.bfloat16),
        wz2=jnp.asarray(wz2), bz_t=jnp.asarray(bz_t), p1=jnp.asarray(p1n),
        w3_2=jnp.asarray(w3_2), w4blk=jnp.asarray(w4blk), b3_t=jnp.asarray(b3_t),
        p2=jnp.asarray(p2n), lw2=jnp.asarray(lw2), sb=jnp.asarray(sb),
    )
    raw = dict(w_ih=w_ih, w_hh=w_hh, b_ih=b_ih, b_hh=b_hh,
               w1=w1, s1=s1, bb1=bb1, w2=w2, s2=s2, bb2=bb2,
               w3=w3, w4=w4, s3=s3, bb3=bb3,
               lw3=jnp.asarray(lin3), p1=jnp.asarray(p1n), p2=jnp.asarray(p2n))
    return params, raw


# ---------------------------------------------------------------------------
# Pure-JAX reference (same math, independent code path) for validation
# ---------------------------------------------------------------------------
def _sigmoid_ref(x):
    return 1.0 / (1.0 + jnp.exp(-x))


def _elu_ref(x):
    return jnp.where(x > 0, x, jnp.exp(jnp.minimum(x, 0.0)) - 1.0)


def reference_forward(x, raw):
    with jax.default_matmul_precision("highest"):
        x3 = x[:, 0]                                    # (B, E, T)
        w_ih, w_hh = raw["w_ih"], raw["w_hh"]
        b = raw["b_ih"] + raw["b_hh"]

        def step(carry, xt):
            h, c = carry
            gates = xt @ w_ih.T + h @ w_hh.T + b
            i = _sigmoid_ref(gates[:, 0 * H:1 * H])
            f = _sigmoid_ref(gates[:, 1 * H:2 * H])
            g = jnp.tanh(gates[:, 2 * H:3 * H])
            o = _sigmoid_ref(gates[:, 3 * H:4 * H])
            c = f * c + i * g
            h = o * jnp.tanh(c)
            return (h, c), h

        init = (jnp.zeros((E, H), jnp.float32), jnp.zeros((E, H), jnp.float32))
        _, ys = lax.scan(step, init, x3)                # (B, E, H)
        z = _sigmoid_ref(ys)

        xp = jnp.pad(z, ((0, 0), (0, 0), (P1PAD, P1PAD)))
        y1 = jnp.zeros((B, F1, E, W0), jnp.float32)
        for k in range(K1):
            y1 = y1 + raw["w1"][:, k].reshape(1, F1, 1, 1) * xp[:, None, :, k:k + W0]
        y1 = y1 * raw["s1"].reshape(1, F1, 1, 1) + raw["bb1"].reshape(1, F1, 1, 1)
        y1r = jnp.repeat(y1, D, axis=1)                 # (B, F1D, E, W0)
        z2 = jnp.einsum("je,bjew->bjw", raw["w2"], y1r)
        z2 = _elu_ref(z2 * raw["s2"].reshape(1, F1D, 1) + raw["bb2"].reshape(1, F1D, 1))
        z2 = jnp.einsum("bjw,wv->bjv", z2, raw["p1"])
        zpp = jnp.pad(z2, ((0, 0), (0, 0), (P2PAD, P2PAD)))
        a3 = jnp.zeros((B, F1D, W1C), jnp.float32)
        for k in range(K2):
            a3 = a3 + raw["w3"][:, k].reshape(1, F1D, 1) * zpp[:, :, k:k + W1C]
        a4 = jnp.einsum("fj,bjw->bfw", raw["w4"], a3)
        a4 = _elu_ref(a4 * raw["s3"].reshape(1, F2, 1) + raw["bb3"].reshape(1, F2, 1))
        feat = jnp.einsum("bfw,wv->bfv", a4, raw["p2"])
        return jnp.einsum("kfv,bfv->bk", raw["lw3"], feat)


if __name__ == "__main__":
    key = jax.random.PRNGKey(0)
    pkey, xkey = jax.random.split(key)
    params, raw = init_params(pkey)
    x = jax.random.normal(xkey, (B, 1, E, T), dtype=jnp.float32)

    fwd = jax.jit(lambda inp: lstm_encoder_eegnet_forward(inp, params))
    out = jax.block_until_ready(fwd(x))
    assert out.shape == (B, NC)

    ref = jax.block_until_ready(reference_forward(x, raw))
    # tolerance accounts for bf16 MXU operands + approx-reciprocal sigmoid in the kernel
    if not np.allclose(np.asarray(out), np.asarray(ref), atol=1e-2, rtol=1e-2):
        raise AssertionError(
            f"kernel/reference mismatch: max abs err "
            f"{float(np.max(np.abs(np.asarray(out) - np.asarray(ref))))}")
    print("KERNEL_OK")
</pallas_src>

<mosaic_0001>
module attributes {stable_mosaic.version = 11 : i64} {
  func.func @_fused_kernel(%arg0: memref<32x64xbf16, #tpu.memory_space<vmem>>, %arg1: memref<64x256xbf16, #tpu.memory_space<vmem>>, %arg2: memref<64x256xbf16, #tpu.memory_space<vmem>>, %arg3: memref<1x256xf32, #tpu.memory_space<vmem>>, %arg4: memref<32x32xbf16, #tpu.memory_space<vmem>>, %arg5: memref<32x16xf32, #tpu.memory_space<vmem>>, %arg6: memref<32x1xf32, #tpu.memory_space<vmem>>, %arg7: memref<65x16xf32, #tpu.memory_space<vmem>>, %arg8: memref<32x8xf32, #tpu.memory_space<vmem>>, %arg9: memref<32x32xf32, #tpu.memory_space<vmem>>, %arg10: memref<32x1xf32, #tpu.memory_space<vmem>>, %arg11: memref<17x2xf32, #tpu.memory_space<vmem>>, %arg12: memref<32x4xf32, #tpu.memory_space<vmem>>, %arg13: memref<4x32xf32, #tpu.memory_space<vmem>>, %arg14: memref<4x2xf32, #tpu.memory_space<vmem>>) attributes {dimension_semantics = [], scalar_prefetch = 0 : i64, scratch_operands = 0 : i64, tpu.core_type = #tpu.core_type<tc>} {
    %c0 = arith.constant 0 : index
    %c0_0 = arith.constant 0 : index
    %0 = vector.load %arg0[%c0, %c0_0] : memref<32x64xbf16, #tpu.memory_space<vmem>>, vector<32x64xbf16>
    %c0_1 = arith.constant 0 : index
    %c0_2 = arith.constant 0 : index
    %1 = vector.load %arg1[%c0_1, %c0_2] : memref<64x256xbf16, #tpu.memory_space<vmem>>, vector<64x256xbf16>
    %cst = arith.constant dense<0.000000e+00> : vector<32x256xf32>
    %2 = tpu.matmul %0, %1, %cst {dimension_numbers = #tpu.dot_dimension_numbers<[1], [0], [0], [1], [0, 0, 1, 1], [], []>} : vector<32x64xbf16>, vector<64x256xbf16>, vector<32x256xf32> -> vector<32x256xf32>
    %c0_3 = arith.constant 0 : index
    %c0_4 = arith.constant 0 : index
    %3 = vector.load %arg3[%c0_3, %c0_4] : memref<1x256xf32, #tpu.memory_space<vmem>>, vector<1x256xf32>
    %4 = vector.broadcast %3 : vector<1x256xf32> to vector<32x256xf32>
    %5 = arith.addf %2, %4 : vector<32x256xf32>
    %c0_5 = arith.constant 0 : index
    %c0_6 = arith.constant 0 : index
    %6 = vector.load %arg2[%c0_5, %c0_6] : memref<64x256xbf16, #tpu.memory_space<vmem>>, vector<64x256xbf16>
    %7 = vector.extract_strided_slice %5 {offsets = [0, 0], sizes = [8, 256], strides = [1, 1]} : vector<32x256xf32> to vector<8x256xf32>
    %8 = vector.extract_strided_slice %7 {offsets = [0, 0], sizes = [8, 192], strides = [1, 1]} : vector<8x256xf32> to vector<8x192xf32>
    %cst_7 = arith.constant 0.000000e+00 : f32
    %9 = vector.broadcast %cst_7 : f32 to vector<8x192xf32>
    %10 = arith.subf %9, %8 : vector<8x192xf32>
    %11 = math.exp %10 : vector<8x192xf32>
    %cst_8 = arith.constant 1.000000e+00 : f32
    %12 = vector.broadcast %cst_8 : f32 to vector<8x192xf32>
    %13 = arith.addf %12, %11 : vector<8x192xf32>
    %14 = tpu.reciprocal %13 {approx = true} : vector<8x192xf32> -> vector<8x192xf32>
    %15 = vector.extract_strided_slice %14 {offsets = [0, 0], sizes = [8, 64], strides = [1, 1]} : vector<8x192xf32> to vector<8x64xf32>
    %16 = vector.extract_strided_slice %14 {offsets = [0, 128], sizes = [8, 64], strides = [1, 1]} : vector<8x192xf32> to vector<8x64xf32>
    %17 = vector.extract_strided_slice %7 {offsets = [0, 192], sizes = [8, 64], strides = [1, 1]} : vector<8x256xf32> to vector<8x64xf32>
    %18 = math.tanh %17 : vector<8x64xf32>
    %19 = arith.mulf %15, %18 : vector<8x64xf32>
    %20 = math.tanh %19 : vector<8x64xf32>
    %21 = arith.mulf %16, %20 : vector<8x64xf32>
    %22 = vector.extract_strided_slice %5 {offsets = [8, 0], sizes = [8, 256], strides = [1, 1]} : vector<32x256xf32> to vector<8x256xf32>
    %23 = arith.truncf %21 : vector<8x64xf32> to vector<8x64xbf16>
    %cst_9 = arith.constant dense<0.000000e+00> : vector<8x256xf32>
    %24 = tpu.matmul %23, %6, %cst_9 {dimension_numbers = #tpu.dot_dimension_numbers<[1], [0], [0], [1], [0, 0, 1, 1], [], []>} : vector<8x64xbf16>, vector<64x256xbf16>, vector<8x256xf32> -> vector<8x256xf32>
    %25 = arith.addf %22, %24 : vector<8x256xf32>
    %26 = vector.extract_strided_slice %25 {offsets = [0, 0], sizes = [8, 192], strides = [1, 1]} : vector<8x256xf32> to vector<8x192xf32>
    %cst_10 = arith.constant 0.000000e+00 : f32
    %27 = vector.broadcast %cst_10 : f32 to vector<8x192xf32>
    %28 = arith.subf %27, %26 : vector<8x192xf32>
    %29 = math.exp %28 : vector<8x192xf32>
    %cst_11 = arith.constant 1.000000e+00 : f32
    %30 = vector.broadcast %cst_11 : f32 to vector<8x192xf32>
    %31 = arith.addf %30, %29 : vector<8x192xf32>
    %32 = tpu.reciprocal %31 {approx = true} : vector<8x192xf32> -> vector<8x192xf32>
    %33 = vector.extract_strided_slice %32 {offsets = [0, 0], sizes = [8, 64], strides = [1, 1]} : vector<8x192xf32> to vector<8x64xf32>
    %34 = vector.extract_strided_slice %32 {offsets = [0, 64], sizes = [8, 64], strides = [1, 1]} : vector<8x192xf32> to vector<8x64xf32>
    %35 = vector.extract_strided_slice %32 {offsets = [0, 128], sizes = [8, 64], strides = [1, 1]} : vector<8x192xf32> to vector<8x64xf32>
    %36 = vector.extract_strided_slice %25 {offsets = [0, 192], sizes = [8, 64], strides = [1, 1]} : vector<8x256xf32> to vector<8x64xf32>
    %37 = math.tanh %36 : vector<8x64xf32>
    %38 = arith.mulf %34, %19 : vector<8x64xf32>
    %39 = arith.mulf %33, %37 : vector<8x64xf32>
    %40 = arith.addf %38, %39 : vector<8x64xf32>
    %41 = math.tanh %40 : vector<8x64xf32>
    %42 = arith.mulf %35, %41 : vector<8x64xf32>
    %43 = vector.extract_strided_slice %5 {offsets = [16, 0], sizes = [8, 256], strides = [1, 1]} : vector<32x256xf32> to vector<8x256xf32>
    %44 = arith.truncf %42 : vector<8x64xf32> to vector<8x64xbf16>
    %cst_12 = arith.constant dense<0.000000e+00> : vector<8x256xf32>
    %45 = tpu.matmul %44, %6, %cst_12 {dimension_numbers = #tpu.dot_dimension_numbers<[1], [0], [0], [1], [0, 0, 1, 1], [], []>} : vector<8x64xbf16>, vector<64x256xbf16>, vector<8x256xf32> -> vector<8x256xf32>
    %46 = arith.addf %43, %45 : vector<8x256xf32>
    %47 = vector.extract_strided_slice %46 {offsets = [0, 0], sizes = [8, 192], strides = [1, 1]} : vector<8x256xf32> to vector<8x192xf32>
    %cst_13 = arith.constant 0.000000e+00 : f32
    %48 = vector.broadcast %cst_13 : f32 to vector<8x192xf32>
    %49 = arith.subf %48, %47 : vector<8x192xf32>
    %50 = math.exp %49 : vector<8x192xf32>
    %cst_14 = arith.constant 1.000000e+00 : f32
    %51 = vector.broadcast %cst_14 : f32 to vector<8x192xf32>
    %52 = arith.addf %51, %50 : vector<8x192xf32>
    %53 = tpu.reciprocal %52 {approx = true} : vector<8x192xf32> -> vector<8x192xf32>
    %54 = vector.extract_strided_slice %53 {offsets = [0, 0], sizes = [8, 64], strides = [1, 1]} : vector<8x192xf32> to vector<8x64xf32>
    %55 = vector.extract_strided_slice %53 {offsets = [0, 64], sizes = [8, 64], strides = [1, 1]} : vector<8x192xf32> to vector<8x64xf32>
    %56 = vector.extract_strided_slice %53 {offsets = [0, 128], sizes = [8, 64], strides = [1, 1]} : vector<8x192xf32> to vector<8x64xf32>
    %57 = vector.extract_strided_slice %46 {offsets = [0, 192], sizes = [8, 64], strides = [1, 1]} : vector<8x256xf32> to vector<8x64xf32>
    %58 = math.tanh %57 : vector<8x64xf32>
    %59 = arith.mulf %55, %40 : vector<8x64xf32>
    %60 = arith.mulf %54, %58 : vector<8x64xf32>
    %61 = arith.addf %59, %60 : vector<8x64xf32>
    %62 = math.tanh %61 : vector<8x64xf32>
    %63 = arith.mulf %56, %62 : vector<8x64xf32>
    %64 = vector.extract_strided_slice %5 {offsets = [24, 0], sizes = [8, 256], strides = [1, 1]} : vector<32x256xf32> to vector<8x256xf32>
    %65 = arith.truncf %63 : vector<8x64xf32> to vector<8x64xbf16>
    %cst_15 = arith.constant dense<0.000000e+00> : vector<8x256xf32>
    %66 = tpu.matmul %65, %6, %cst_15 {dimension_numbers = #tpu.dot_dimension_numbers<[1], [0], [0], [1], [0, 0, 1, 1], [], []>} : vector<8x64xbf16>, vector<64x256xbf16>, vector<8x256xf32> -> vector<8x256xf32>
    %67 = arith.addf %64, %66 : vector<8x256xf32>
    %68 = vector.extract_strided_slice %67 {offsets = [0, 0], sizes = [8, 192], strides = [1, 1]} : vector<8x256xf32> to vector<8x192xf32>
    %cst_16 = arith.constant 0.000000e+00 : f32
    %69 = vector.broadcast %cst_16 : f32 to vector<8x192xf32>
    %70 = arith.subf %69, %68 : vector<8x192xf32>
    %71 = math.exp %70 : vector<8x192xf32>
    %cst_17 = arith.constant 1.000000e+00 : f32
    %72 = vector.broadcast %cst_17 : f32 to vector<8x192xf32>
    %73 = arith.addf %72, %71 : vector<8x192xf32>
    %74 = tpu.reciprocal %73 {approx = true} : vector<8x192xf32> -> vector<8x192xf32>
    %75 = vector.extract_strided_slice %74 {offsets = [0, 0], sizes = [8, 64], strides = [1, 1]} : vector<8x192xf32> to vector<8x64xf32>
    %76 = vector.extract_strided_slice %74 {offsets = [0, 64], sizes = [8, 64], strides = [1, 1]} : vector<8x192xf32> to vector<8x64xf32>
    %77 = vector.extract_strided_slice %74 {offsets = [0, 128], sizes = [8, 64], strides = [1, 1]} : vector<8x192xf32> to vector<8x64xf32>
    %78 = vector.extract_strided_slice %67 {offsets = [0, 192], sizes = [8, 64], strides = [1, 1]} : vector<8x256xf32> to vector<8x64xf32>
    %79 = math.tanh %78 : vector<8x64xf32>
    %80 = arith.mulf %76, %61 : vector<8x64xf32>
    %81 = arith.mulf %75, %79 : vector<8x64xf32>
    %82 = arith.addf %80, %81 : vector<8x64xf32>
    %83 = math.tanh %82 : vector<8x64xf32>
    %84 = arith.mulf %77, %83 : vector<8x64xf32>
    %85 = tpu.concatenate %21, %42, %63, %84 in 0 : vector<8x64xf32>, vector<8x64xf32>, vector<8x64xf32>, vector<8x64xf32> -> vector<32x64xf32>
    %cst_18 = arith.constant 0.000000e+00 : f32
    %86 = vector.broadcast %cst_18 : f32 to vector<32x64xf32>
    %87 = arith.subf %86, %85 : vector<32x64xf32>
    %88 = math.exp %87 : vector<32x64xf32>
    %cst_19 = arith.constant 1.000000e+00 : f32
    %89 = vector.broadcast %cst_19 : f32 to vector<32x64xf32>
    %90 = arith.addf %89, %88 : vector<32x64xf32>
    %91 = tpu.reciprocal %90 {approx = true} : vector<32x64xf32> -> vector<32x64xf32>
    %c0_20 = arith.constant 0 : index
    %c0_21 = arith.constant 0 : index
    %92 = vector.load %arg4[%c0_20, %c0_21] : memref<32x32xbf16, #tpu.memory_space<vmem>>, vector<32x32xbf16>
    %93 = arith.truncf %91 : vector<32x64xf32> to vector<32x64xbf16>
    %cst_22 = arith.constant dense<0.000000e+00> : vector<32x64xf32>
    %94 = tpu.matmul %92, %93, %cst_22 {dimension_numbers = #tpu.dot_dimension_numbers<[1], [0], [0], [1], [0, 0, 1, 1], [], []>} : vector<32x32xbf16>, vector<32x64xbf16>, vector<32x64xf32> -> vector<32x64xf32>
    %cst_23 = arith.constant 0.000000e+00 : f32
    %95 = vector.broadcast %cst_23 : f32 to vector<32x8xf32>
    %96 = tpu.concatenate %95, %94, %95 in 1 : vector<32x8xf32>, vector<32x64xf32>, vector<32x8xf32> -> vector<32x80xf32>
    %c0_24 = arith.constant 0 : index
    %c0_25 = arith.constant 0 : index
    %97 = vector.load %arg5[%c0_24, %c0_25] : memref<32x16xf32, #tpu.memory_space<vmem>>, vector<32x16xf32>
    %cst_26 = arith.constant 0.000000e+00 : f32
    %98 = vector.broadcast %cst_26 : f32 to vector<32x65xf32>
    %99 = vector.extract_strided_slice %97 {offsets = [0, 0], sizes = [32, 1], strides = [1, 1]} : vector<32x16xf32> to vector<32x1xf32>
    %100 = vector.extract_strided_slice %96 {offsets = [0, 0], sizes = [32, 65], strides = [1, 1]} : vector<32x80xf32> to vector<32x65xf32>
    %101 = vector.broadcast %99 : vector<32x1xf32> to vector<32x65xf32>
    %102 = arith.mulf %101, %100 : vector<32x65xf32>
    %103 = arith.addf %98, %102 : vector<32x65xf32>
    %104 = vector.extract_strided_slice %97 {offsets = [0, 1], sizes = [32, 1], strides = [1, 1]} : vector<32x16xf32> to vector<32x1xf32>
    %105 = vector.extract_strided_slice %96 {offsets = [0, 1], sizes = [32, 65], strides = [1, 1]} : vector<32x80xf32> to vector<32x65xf32>
    %106 = vector.broadcast %104 : vector<32x1xf32> to vector<32x65xf32>
    %107 = arith.mulf %106, %105 : vector<32x65xf32>
    %108 = arith.addf %103, %107 : vector<32x65xf32>
    %109 = vector.extract_strided_slice %97 {offsets = [0, 2], sizes = [32, 1], strides = [1, 1]} : vector<32x16xf32> to vector<32x1xf32>
    %110 = vector.extract_strided_slice %96 {offsets = [0, 2], sizes = [32, 65], strides = [1, 1]} : vector<32x80xf32> to vector<32x65xf32>
    %111 = vector.broadcast %109 : vector<32x1xf32> to vector<32x65xf32>
    %112 = arith.mulf %111, %110 : vector<32x65xf32>
    %113 = arith.addf %108, %112 : vector<32x65xf32>
    %114 = vector.extract_strided_slice %97 {offsets = [0, 3], sizes = [32, 1], strides = [1, 1]} : vector<32x16xf32> to vector<32x1xf32>
    %115 = vector.extract_strided_slice %96 {offsets = [0, 3], sizes = [32, 65], strides = [1, 1]} : vector<32x80xf32> to vector<32x65xf32>
    %116 = vector.broadcast %114 : vector<32x1xf32> to vector<32x65xf32>
    %117 = arith.mulf %116, %115 : vector<32x65xf32>
    %118 = arith.addf %113, %117 : vector<32x65xf32>
    %119 = vector.extract_strided_slice %97 {offsets = [0, 4], sizes = [32, 1], strides = [1, 1]} : vector<32x16xf32> to vector<32x1xf32>
    %120 = vector.extract_strided_slice %96 {offsets = [0, 4], sizes = [32, 65], strides = [1, 1]} : vector<32x80xf32> to vector<32x65xf32>
    %121 = vector.broadcast %119 : vector<32x1xf32> to vector<32x65xf32>
    %122 = arith.mulf %121, %120 : vector<32x65xf32>
    %123 = arith.addf %118, %122 : vector<32x65xf32>
    %124 = vector.extract_strided_slice %97 {offsets = [0, 5], sizes = [32, 1], strides = [1, 1]} : vector<32x16xf32> to vector<32x1xf32>
    %125 = vector.extract_strided_slice %96 {offsets = [0, 5], sizes = [32, 65], strides = [1, 1]} : vector<32x80xf32> to vector<32x65xf32>
    %126 = vector.broadcast %124 : vector<32x1xf32> to vector<32x65xf32>
    %127 = arith.mulf %126, %125 : vector<32x65xf32>
    %128 = arith.addf %123, %127 : vector<32x65xf32>
    %129 = vector.extract_strided_slice %97 {offsets = [0, 6], sizes = [32, 1], strides = [1, 1]} : vector<32x16xf32> to vector<32x1xf32>
    %130 = vector.extract_strided_slice %96 {offsets = [0, 6], sizes = [32, 65], strides = [1, 1]} : vector<32x80xf32> to vector<32x65xf32>
    %131 = vector.broadcast %129 : vector<32x1xf32> to vector<32x65xf32>
    %132 = arith.mulf %131, %130 : vector<32x65xf32>
    %133 = arith.addf %128, %132 : vector<32x65xf32>
    %134 = vector.extract_strided_slice %97 {offsets = [0, 7], sizes = [32, 1], strides = [1, 1]} : vector<32x16xf32> to vector<32x1xf32>
    %135 = vector.extract_strided_slice %96 {offsets = [0, 7], sizes = [32, 65], strides = [1, 1]} : vector<32x80xf32> to vector<32x65xf32>
    %136 = vector.broadcast %134 : vector<32x1xf32> to vector<32x65xf32>
    %137 = arith.mulf %136, %135 : vector<32x65xf32>
    %138 = arith.addf %133, %137 : vector<32x65xf32>
    %139 = vector.extract_strided_slice %97 {offsets = [0, 8], sizes = [32, 1], strides = [1, 1]} : vector<32x16xf32> to vector<32x1xf32>
    %140 = vector.extract_strided_slice %96 {offsets = [0, 8], sizes = [32, 65], strides = [1, 1]} : vector<32x80xf32> to vector<32x65xf32>
    %141 = vector.broadcast %139 : vector<32x1xf32> to vector<32x65xf32>
    %142 = arith.mulf %141, %140 : vector<32x65xf32>
    %143 = arith.addf %138, %142 : vector<32x65xf32>
    %144 = vector.extract_strided_slice %97 {offsets = [0, 9], sizes = [32, 1], strides = [1, 1]} : vector<32x16xf32> to vector<32x1xf32>
    %145 = vector.extract_strided_slice %96 {offsets = [0, 9], sizes = [32, 65], strides = [1, 1]} : vector<32x80xf32> to vector<32x65xf32>
    %146 = vector.broadcast %144 : vector<32x1xf32> to vector<32x65xf32>
    %147 = arith.mulf %146, %145 : vector<32x65xf32>
    %148 = arith.addf %143, %147 : vector<32x65xf32>
    %149 = vector.extract_strided_slice %97 {offsets = [0, 10], sizes = [32, 1], strides = [1, 1]} : vector<32x16xf32> to vector<32x1xf32>
    %150 = vector.extract_strided_slice %96 {offsets = [0, 10], sizes = [32, 65], strides = [1, 1]} : vector<32x80xf32> to vector<32x65xf32>
    %151 = vector.broadcast %149 : vector<32x1xf32> to vector<32x65xf32>
    %152 = arith.mulf %151, %150 : vector<32x65xf32>
    %153 = arith.addf %148, %152 : vector<32x65xf32>
    %154 = vector.extract_strided_slice %97 {offsets = [0, 11], sizes = [32, 1], strides = [1, 1]} : vector<32x16xf32> to vector<32x1xf32>
    %155 = vector.extract_strided_slice %96 {offsets = [0, 11], sizes = [32, 65], strides = [1, 1]} : vector<32x80xf32> to vector<32x65xf32>
    %156 = vector.broadcast %154 : vector<32x1xf32> to vector<32x65xf32>
    %157 = arith.mulf %156, %155 : vector<32x65xf32>
    %158 = arith.addf %153, %157 : vector<32x65xf32>
    %159 = vector.extract_strided_slice %97 {offsets = [0, 12], sizes = [32, 1], strides = [1, 1]} : vector<32x16xf32> to vector<32x1xf32>
    %160 = vector.extract_strided_slice %96 {offsets = [0, 12], sizes = [32, 65], strides = [1, 1]} : vector<32x80xf32> to vector<32x65xf32>
    %161 = vector.broadcast %159 : vector<32x1xf32> to vector<32x65xf32>
    %162 = arith.mulf %161, %160 : vector<32x65xf32>
    %163 = arith.addf %158, %162 : vector<32x65xf32>
    %164 = vector.extract_strided_slice %97 {offsets = [0, 13], sizes = [32, 1], strides = [1, 1]} : vector<32x16xf32> to vector<32x1xf32>
    %165 = vector.extract_strided_slice %96 {offsets = [0, 13], sizes = [32, 65], strides = [1, 1]} : vector<32x80xf32> to vector<32x65xf32>
    %166 = vector.broadcast %164 : vector<32x1xf32> to vector<32x65xf32>
    %167 = arith.mulf %166, %165 : vector<32x65xf32>
    %168 = arith.addf %163, %167 : vector<32x65xf32>
    %169 = vector.extract_strided_slice %97 {offsets = [0, 14], sizes = [32, 1], strides = [1, 1]} : vector<32x16xf32> to vector<32x1xf32>
    %170 = vector.extract_strided_slice %96 {offsets = [0, 14], sizes = [32, 65], strides = [1, 1]} : vector<32x80xf32> to vector<32x65xf32>
    %171 = vector.broadcast %169 : vector<32x1xf32> to vector<32x65xf32>
    %172 = arith.mulf %171, %170 : vector<32x65xf32>
    %173 = arith.addf %168, %172 : vector<32x65xf32>
    %174 = vector.extract_strided_slice %97 {offsets = [0, 15], sizes = [32, 1], strides = [1, 1]} : vector<32x16xf32> to vector<32x1xf32>
    %175 = vector.extract_strided_slice %96 {offsets = [0, 15], sizes = [32, 65], strides = [1, 1]} : vector<32x80xf32> to vector<32x65xf32>
    %176 = vector.broadcast %174 : vector<32x1xf32> to vector<32x65xf32>
    %177 = arith.mulf %176, %175 : vector<32x65xf32>
    %178 = arith.addf %173, %177 : vector<32x65xf32>
    %c0_27 = arith.constant 0 : index
    %c0_28 = arith.constant 0 : index
    %179 = vector.load %arg6[%c0_27, %c0_28] : memref<32x1xf32, #tpu.memory_space<vmem>>, vector<32x1xf32>
    %180 = vector.broadcast %179 : vector<32x1xf32> to vector<32x65xf32>
    %181 = arith.addf %178, %180 : vector<32x65xf32>
    %cst_29 = arith.constant 0.000000e+00 : f32
    %182 = vector.broadcast %cst_29 : f32 to vector<32x65xf32>
    %183 = arith.cmpf ogt, %181, %182 : vector<32x65xf32>
    %cst_30 = arith.constant 0.000000e+00 : f32
    %184 = vector.broadcast %cst_30 : f32 to vector<32x65xf32>
    %185 = arith.minimumf %181, %184 : vector<32x65xf32>
    %186 = math.exp %185 : vector<32x65xf32>
    %cst_31 = arith.constant 1.000000e+00 : f32
    %187 = vector.broadcast %cst_31 : f32 to vector<32x65xf32>
    %188 = arith.subf %186, %187 : vector<32x65xf32>
    %189 = arith.select %183, %181, %188 : vector<32x65xi1>, vector<32x65xf32>
    %c0_32 = arith.constant 0 : index
    %c0_33 = arith.constant 0 : index
    %190 = vector.load %arg7[%c0_32, %c0_33] : memref<65x16xf32, #tpu.memory_space<vmem>>, vector<65x16xf32>
    %cst_34 = arith.constant dense<0.000000e+00> : vector<32x16xf32>
    %191 = tpu.matmul %189, %190, %cst_34 {dimension_numbers = #tpu.dot_dimension_numbers<[1], [0], [0], [1], [0, 0, 1, 1], [], []>} : vector<32x65xf32>, vector<65x16xf32>, vector<32x16xf32> -> vector<32x16xf32>
    %cst_35 = arith.constant 0.000000e+00 : f32
    %192 = vector.broadcast %cst_35 : f32 to vector<32x4xf32>
    %193 = tpu.concatenate %192, %191, %192 in 1 : vector<32x4xf32>, vector<32x16xf32>, vector<32x4xf32> -> vector<32x24xf32>
    %c0_36 = arith.constant 0 : index
    %c0_37 = arith.constant 0 : index
    %194 = vector.load %arg8[%c0_36, %c0_37] : memref<32x8xf32, #tpu.memory_space<vmem>>, vector<32x8xf32>
    %cst_38 = arith.constant 0.000000e+00 : f32
    %195 = vector.broadcast %cst_38 : f32 to vector<32x17xf32>
    %196 = vector.extract_strided_slice %194 {offsets = [0, 0], sizes = [32, 1], strides = [1, 1]} : vector<32x8xf32> to vector<32x1xf32>
    %197 = vector.extract_strided_slice %193 {offsets = [0, 0], sizes = [32, 17], strides = [1, 1]} : vector<32x24xf32> to vector<32x17xf32>
    %198 = vector.broadcast %196 : vector<32x1xf32> to vector<32x17xf32>
    %199 = arith.mulf %198, %197 : vector<32x17xf32>
    %200 = arith.addf %195, %199 : vector<32x17xf32>
    %201 = vector.extract_strided_slice %194 {offsets = [0, 1], sizes = [32, 1], strides = [1, 1]} : vector<32x8xf32> to vector<32x1xf32>
    %202 = vector.extract_strided_slice %193 {offsets = [0, 1], sizes = [32, 17], strides = [1, 1]} : vector<32x24xf32> to vector<32x17xf32>
    %203 = vector.broadcast %201 : vector<32x1xf32> to vector<32x17xf32>
    %204 = arith.mulf %203, %202 : vector<32x17xf32>
    %205 = arith.addf %200, %204 : vector<32x17xf32>
    %206 = vector.extract_strided_slice %194 {offsets = [0, 2], sizes = [32, 1], strides = [1, 1]} : vector<32x8xf32> to vector<32x1xf32>
    %207 = vector.extract_strided_slice %193 {offsets = [0, 2], sizes = [32, 17], strides = [1, 1]} : vector<32x24xf32> to vector<32x17xf32>
    %208 = vector.broadcast %206 : vector<32x1xf32> to vector<32x17xf32>
    %209 = arith.mulf %208, %207 : vector<32x17xf32>
    %210 = arith.addf %205, %209 : vector<32x17xf32>
    %211 = vector.extract_strided_slice %194 {offsets = [0, 3], sizes = [32, 1], strides = [1, 1]} : vector<32x8xf32> to vector<32x1xf32>
    %212 = vector.extract_strided_slice %193 {offsets = [0, 3], sizes = [32, 17], strides = [1, 1]} : vector<32x24xf32> to vector<32x17xf32>
    %213 = vector.broadcast %211 : vector<32x1xf32> to vector<32x17xf32>
    %214 = arith.mulf %213, %212 : vector<32x17xf32>
    %215 = arith.addf %210, %214 : vector<32x17xf32>
    %216 = vector.extract_strided_slice %194 {offsets = [0, 4], sizes = [32, 1], strides = [1, 1]} : vector<32x8xf32> to vector<32x1xf32>
    %217 = vector.extract_strided_slice %193 {offsets = [0, 4], sizes = [32, 17], strides = [1, 1]} : vector<32x24xf32> to vector<32x17xf32>
    %218 = vector.broadcast %216 : vector<32x1xf32> to vector<32x17xf32>
    %219 = arith.mulf %218, %217 : vector<32x17xf32>
    %220 = arith.addf %215, %219 : vector<32x17xf32>
    %221 = vector.extract_strided_slice %194 {offsets = [0, 5], sizes = [32, 1], strides = [1, 1]} : vector<32x8xf32> to vector<32x1xf32>
    %222 = vector.extract_strided_slice %193 {offsets = [0, 5], sizes = [32, 17], strides = [1, 1]} : vector<32x24xf32> to vector<32x17xf32>
    %223 = vector.broadcast %221 : vector<32x1xf32> to vector<32x17xf32>
    %224 = arith.mulf %223, %222 : vector<32x17xf32>
    %225 = arith.addf %220, %224 : vector<32x17xf32>
    %226 = vector.extract_strided_slice %194 {offsets = [0, 6], sizes = [32, 1], strides = [1, 1]} : vector<32x8xf32> to vector<32x1xf32>
    %227 = vector.extract_strided_slice %193 {offsets = [0, 6], sizes = [32, 17], strides = [1, 1]} : vector<32x24xf32> to vector<32x17xf32>
    %228 = vector.broadcast %226 : vector<32x1xf32> to vector<32x17xf32>
    %229 = arith.mulf %228, %227 : vector<32x17xf32>
    %230 = arith.addf %225, %229 : vector<32x17xf32>
    %231 = vector.extract_strided_slice %194 {offsets = [0, 7], sizes = [32, 1], strides = [1, 1]} : vector<32x8xf32> to vector<32x1xf32>
    %232 = vector.extract_strided_slice %193 {offsets = [0, 7], sizes = [32, 17], strides = [1, 1]} : vector<32x24xf32> to vector<32x17xf32>
    %233 = vector.broadcast %231 : vector<32x1xf32> to vector<32x17xf32>
    %234 = arith.mulf %233, %232 : vector<32x17xf32>
    %235 = arith.addf %230, %234 : vector<32x17xf32>
    %c0_39 = arith.constant 0 : index
    %c0_40 = arith.constant 0 : index
    %236 = vector.load %arg9[%c0_39, %c0_40] : memref<32x32xf32, #tpu.memory_space<vmem>>, vector<32x32xf32>
    %cst_41 = arith.constant dense<0.000000e+00> : vector<32x17xf32>
    %237 = tpu.matmul %236, %235, %cst_41 {dimension_numbers = #tpu.dot_dimension_numbers<[1], [0], [0], [1], [0, 0, 1, 1], [], []>} : vector<32x32xf32>, vector<32x17xf32>, vector<32x17xf32> -> vector<32x17xf32>
    %c0_42 = arith.constant 0 : index
    %c0_43 = arith.constant 0 : index
    %238 = vector.load %arg10[%c0_42, %c0_43] : memref<32x1xf32, #tpu.memory_space<vmem>>, vector<32x1xf32>
    %239 = vector.broadcast %238 : vector<32x1xf32> to vector<32x17xf32>
    %240 = arith.addf %237, %239 : vector<32x17xf32>
    %cst_44 = arith.constant 0.000000e+00 : f32
    %241 = vector.broadcast %cst_44 : f32 to vector<32x17xf32>
    %242 = arith.cmpf ogt, %240, %241 : vector<32x17xf32>
    %cst_45 = arith.constant 0.000000e+00 : f32
    %243 = vector.broadcast %cst_45 : f32 to vector<32x17xf32>
    %244 = arith.minimumf %240, %243 : vector<32x17xf32>
    %245 = math.exp %244 : vector<32x17xf32>
    %cst_46 = arith.constant 1.000000e+00 : f32
    %246 = vector.broadcast %cst_46 : f32 to vector<32x17xf32>
    %247 = arith.subf %245, %246 : vector<32x17xf32>
    %248 = arith.select %242, %240, %247 : vector<32x17xi1>, vector<32x17xf32>
    %c0_47 = arith.constant 0 : index
    %c0_48 = arith.constant 0 : index
    %249 = vector.load %arg11[%c0_47, %c0_48] : memref<17x2xf32, #tpu.memory_space<vmem>>, vector<17x2xf32>
    %cst_49 = arith.constant dense<0.000000e+00> : vector<32x2xf32>
    %250 = tpu.matmul %248, %249, %cst_49 {dimension_numbers = #tpu.dot_dimension_numbers<[1], [0], [0], [1], [0, 0, 1, 1], [], []>} : vector<32x17xf32>, vector<17x2xf32>, vector<32x2xf32> -> vector<32x2xf32>
    %c0_50 = arith.constant 0 : index
    %c0_51 = arith.constant 0 : index
    %251 = vector.load %arg12[%c0_50, %c0_51] : memref<32x4xf32, #tpu.memory_space<vmem>>, vector<32x4xf32>
    %cst_52 = arith.constant 0.000000e+00 : f32
    %252 = vector.broadcast %cst_52 : f32 to vector<32x2xf32>
    %253 = vector.extract_strided_slice %250 {offsets = [0, 0], sizes = [32, 1], strides = [1, 1]} : vector<32x2xf32> to vector<32x1xf32>
    %254 = vector.extract_strided_slice %251 {offsets = [0, 0], sizes = [32, 2], strides = [1, 1]} : vector<32x4xf32> to vector<32x2xf32>
    %255 = vector.broadcast %253 : vector<32x1xf32> to vector<32x2xf32>
    %256 = arith.mulf %255, %254 : vector<32x2xf32>
    %257 = arith.addf %252, %256 : vector<32x2xf32>
    %258 = vector.extract_strided_slice %250 {offsets = [0, 1], sizes = [32, 1], strides = [1, 1]} : vector<32x2xf32> to vector<32x1xf32>
    %259 = vector.extract_strided_slice %251 {offsets = [0, 2], sizes = [32, 2], strides = [1, 1]} : vector<32x4xf32> to vector<32x2xf32>
    %260 = vector.broadcast %258 : vector<32x1xf32> to vector<32x2xf32>
    %261 = arith.mulf %260, %259 : vector<32x2xf32>
    %262 = arith.addf %257, %261 : vector<32x2xf32>
    %c0_53 = arith.constant 0 : index
    %c0_54 = arith.constant 0 : index
    %263 = vector.load %arg13[%c0_53, %c0_54] : memref<4x32xf32, #tpu.memory_space<vmem>>, vector<4x32xf32>
    %cst_55 = arith.constant dense<0.000000e+00> : vector<4x2xf32>
    %264 = tpu.matmul %263, %262, %cst_55 {dimension_numbers = #tpu.dot_dimension_numbers<[1], [0], [0], [1], [0, 0, 1, 1], [], []>} : vector<4x32xf32>, vector<32x2xf32>, vector<4x2xf32> -> vector<4x2xf32>
    %c0_56 = arith.constant 0 : index
    %c0_57 = arith.constant 0 : index
    %265 = vector.load %arg14[%c0_56, %c0_57] : memref<4x2xf32, #tpu.memory_space<vmem>>, vector<4x2xf32>
    tpu.vector_store %arg14[%c0_56, %c0_57], %264 {strides = array<i32>} : memref<4x2xf32, #tpu.memory_space<vmem>>, vector<4x2xf32>,
    return
  }
}

</mosaic_0001>

<llo_original>
// kernel: _lambda_.1
$region0: #{_lambda_.1}
  #allocation0 [shape = 'u32[]', space=smem, size = 0x4, offset = 0x4, fixed_abs, tag = 'smem constant byte address 0x4 - core index']
  #allocation1 [shape = 'u32[72,128]{1,0:T(1,128)}', space=vmem, size = 0x9000, scoped, tag = 'internal scratch']
  %s0 = inlined_call_operand.vmem [shape: bf16[32,64], index: 0, kind: input, shape index: {}]
  %s1 = inlined_call_operand.hbm [shape: bf16[64,256], index: 1, kind: input, shape index: {}]
  %s2 = inlined_call_operand.hbm [shape: bf16[64,256], index: 2, kind: input, shape index: {}]
  %s3 = inlined_call_operand.hbm [shape: f32[1,256], index: 3, kind: input, shape index: {}]
  %s4 = inlined_call_operand.hbm [shape: bf16[32,32], index: 4, kind: input, shape index: {}]
  %s5 = inlined_call_operand.hbm [shape: f32[32,16], index: 5, kind: input, shape index: {}]
  %s6 = inlined_call_operand.hbm [shape: f32[32,1], index: 6, kind: input, shape index: {}]
  %s7 = inlined_call_operand.hbm [shape: f32[65,16], index: 7, kind: input, shape index: {}]
  %s8 = inlined_call_operand.hbm [shape: f32[32,8], index: 8, kind: input, shape index: {}]
  %s9 = inlined_call_operand.hbm [shape: f32[32,32], index: 9, kind: input, shape index: {}]
  %s10 = inlined_call_operand.hbm [shape: f32[32,1], index: 10, kind: input, shape index: {}]
  %s11 = inlined_call_operand.vmem [shape: f32[17,2], index: 11, kind: input, shape index: {}]
  %s12 = inlined_call_operand.vmem [shape: f32[32,4], index: 12, kind: input, shape index: {}]
  %s13 = inlined_call_operand.vmem [shape: f32[4,32], index: 13, kind: input, shape index: {}]
  %s14 = inlined_call_operand.vmem [shape: f32[4,2], index: 14, kind: output, shape index: {}]
  %s15 = sld [smem:[#allocation0]]
  $region106: #{_lambda_.1} parent=0
    _
  %s17 = ssub.s32 1, %s15
  %s18 = scalar_select 0, %s17, %s15
  $region1: #{_lambda_.1} parent=0
    #allocation2 [shape = 'u8[32768]{0}', space=vmem, size = 0x8000, scoped, tag = 'input window, operand 1, single buffered']
    #allocation3 [shape = 's32[1]{0}', space=sflag, size = 0x4, scoped, tag = 'scoped memory for _lambda_.1']
    #allocation4 [shape = 'u8[32768]{0}', space=vmem, size = 0x8000, scoped, tag = 'input window, operand 2, single buffered']
    #allocation5 [shape = 's32[1]{0}', space=sflag, size = 0x4, scoped, tag = 'scoped memory for _lambda_.1']
    #allocation6 [shape = 'u8[1024]{0}', space=vmem, size = 0x400, scoped, tag = 'input window, operand 3, single buffered']
    #allocation7 [shape = 'u8[8192]{0}', space=vmem, size = 0x2000, scoped, tag = 'input window, operand 4, single buffered']
    #allocation8 [shape = 's32[1]{0}', space=sflag, size = 0x4, scoped, tag = 'scoped memory for _lambda_.1']
    #allocation9 [shape = 'u8[16384]{0}', space=vmem, size = 0x4000, scoped, tag = 'input window, operand 5, single buffered']
    #allocation10 [shape = 'u8[16384]{0}', space=vmem, size = 0x4000, scoped, tag = 'input window, operand 6, single buffered']
    #allocation11 [shape = 's32[1]{0}', space=sflag, size = 0x4, scoped, tag = 'scoped memory for _lambda_.1']
    #allocation12 [shape = 'u8[36864]{0}', space=vmem, size = 0x9000, scoped, tag = 'input window, operand 7, single buffered']
    #allocation13 [shape = 'u8[16384]{0}', space=vmem, size = 0x4000, scoped, tag = 'input window, operand 8, single buffered']
    #allocation14 [shape = 's32[1]{0}', space=sflag, size = 0x4, scoped, tag = 'scoped memory for _lambda_.1']
    #allocation15 [shape = 'u8[16384]{0}', space=vmem, size = 0x4000, scoped, tag = 'input window, operand 9, single buffered']
    #allocation16 [shape = 'u8[16384]{0}', space=vmem, size = 0x4000, scoped, tag = 'input window, operand 10, single buffered']
    #allocation17 [shape = 's32[1]{0}', space=sflag, size = 0x4, scoped, tag = 'scoped memory for _lambda_.1']
    %19 = vsyncpa [#allocation3], 0
    %20 = vsyncpa [#allocation5], 0
    %21 = vsyncpa [#allocation8], 0
    %22 = vsyncpa [#allocation11], 0
    %23 = vsyncpa [#allocation14], 0
    %24 = vsyncpa [#allocation17], 0
    // Predicated region
    $region2: #{_lambda_.1} parent=1 // pred_check
      _
    $region3: #{_lambda_.1} parent=1 // pred_check_branch
      %26 = sbr.rel (0) target = $region5
    $region4: #{_lambda_.1} parent=1 // pred_region
      _
    $region5: #{_lambda_.1} parent=1 // pred_fallthru
      _
    // Predicated region
    $region6: #{_lambda_.1} parent=1 // pred_check
      _
    $region7: #{_lambda_.1} parent=1 // pred_check_branch
      %28 = sbr.rel (0) target = $region9
    $region8: #{_lambda_.1} parent=1 // pred_region
      %30 = vsyncadd [#allocation3], 0
      %s31 = sshll.u32 %s1, 4
      %s32 = int_to_ptr.hbm [resolvable:$true] %s31
      %s33 = sshll.u32 [#allocation2], 4
      %s34 = int_to_ptr.vmem [resolvable:$true] %s33
      %39 = dma.hbm_to_vmem [thread:$0]  %s32, 1024, %s34, [#allocation3], 128, 128, 8
    $region9: #{_lambda_.1} parent=1 // pred_fallthru
      _
    // Predicated region
    $region10: #{_lambda_.1} parent=1 // pred_check
      _
    $region11: #{_lambda_.1} parent=1 // pred_check_branch
      %41 = sbr.rel (0) target = $region13
    $region12: #{_lambda_.1} parent=1 // pred_region
      %43 = vsyncadd [#allocation5], 0
      %s44 = sshll.u32 %s2, 4
      %s45 = int_to_ptr.hbm [resolvable:$true] %s44
      %s46 = sshll.u32 [#allocation4], 4
      %s47 = int_to_ptr.vmem [resolvable:$true] %s46
      %52 = dma.hbm_to_vmem [thread:$0]  %s45, 1024, %s47, [#allocation5], 128, 128, 8
    $region13: #{_lambda_.1} parent=1 // pred_fallthru
      _
    // Predicated region
    $region14: #{_lambda_.1} parent=1 // pred_check
      _
    $region15: #{_lambda_.1} parent=1 // pred_check_branch
      %54 = sbr.rel (0) target = $region17
    $region16: #{_lambda_.1} parent=1 // pred_region
      %56 = vsyncadd [#allocation5], 0
      %s58 = sshll.u32 %s3, 4
      %s59 = int_to_ptr.hbm [resolvable:$true] %s58
      %s60 = sshll.u32 [#allocation6], 4
      %s61 = int_to_ptr.vmem [resolvable:$true] %s60
      %63 = dma.hbm_to_vmem [thread:$0]  %s59, 32, %s61, [#allocation5]
    $region17: #{_lambda_.1} parent=1 // pred_fallthru
      _
    // Predicated region
    $region18: #{_lambda_.1} parent=1 // pred_check
      _
    $region19: #{_lambda_.1} parent=1 // pred_check_branch
      %65 = sbr.rel (0) target = $region21
    $region20: #{_lambda_.1} parent=1 // pred_region
      %67 = vsyncadd [#allocation8], 0
      %s68 = sshll.u32 %s4, 4
      %s69 = int_to_ptr.hbm [resolvable:$true] %s68
      %s70 = sshll.u32 [#allocation7], 4
      %s71 = int_to_ptr.vmem [resolvable:$true] %s70
      %76 = dma.hbm_to_vmem [thread:$0]  %s69, 256, %s71, [#allocation8], 64, 64, 4
    $region21: #{_lambda_.1} parent=1 // pred_fallthru
      _
    // Predicated region
    $region22: #{_lambda_.1} parent=1 // pred_check
      _
    $region23: #{_lambda_.1} parent=1 // pred_check_branch
      %78 = sbr.rel (0) target = $region25
    $region24: #{_lambda_.1} parent=1 // pred_region
      %80 = vsyncadd [#allocation8], 0
      %s81 = sshll.u32 %s5, 4
      %s82 = int_to_ptr.hbm [resolvable:$true] %s81
      %s83 = sshll.u32 [#allocation9], 4
      %s84 = int_to_ptr.vmem [resolvable:$true] %s83
      %89 = dma.hbm_to_vmem [thread:$0]  %s82, 512, %s84, [#allocation8], 128, 128, 8
    $region25: #{_lambda_.1} parent=1 // pred_fallthru
      _
    // Predicated region
    $region26: #{_lambda_.1} parent=1 // pred_check
      _
    $region27: #{_lambda_.1} parent=1 // pred_check_branch
      %91 = sbr.rel (0) target = $region29
    $region28: #{_lambda_.1} parent=1 // pred_region
      %93 = vsyncadd [#allocation11], 0
      %s94 = sshll.u32 %s6, 4
      %s95 = int_to_ptr.hbm [resolvable:$true] %s94
      %s96 = sshll.u32 [#allocation10], 4
      %s97 = int_to_ptr.vmem [resolvable:$true] %s96
      %102 = dma.hbm_to_vmem [thread:$0]  %s95, 512, %s97, [#allocation11], 128, 128, 8
    $region29: #{_lambda_.1} parent=1 // pred_fallthru
      _
    // Predicated region
    $region30: #{_lambda_.1} parent=1 // pred_check
      _
    $region31: #{_lambda_.1} parent=1 // pred_check_branch
      %104 = sbr.rel (0) target = $region33
    $region32: #{_lambda_.1} parent=1 // pred_region
      %106 = vsyncadd [#allocation11], 0
      %s107 = sshll.u32 %s7, 4
      %s108 = int_to_ptr.hbm [resolvable:$true] %s107
      %s109 = sshll.u32 [#allocation12], 4
      %s110 = int_to_ptr.vmem [resolvable:$true] %s109
      %115 = dma.hbm_to_vmem [thread:$0]  %s108, 1152, %s110, [#allocation11], 128, 128, 8
    $region33: #{_lambda_.1} parent=1 // pred_fallthru
      _
    // Predicated region
    $region34: #{_lambda_.1} parent=1 // pred_check
      _
    $region35: #{_lambda_.1} parent=1 // pred_check_branch
      %117 = sbr.rel (0) target = $region37
    $region36: #{_lambda_.1} parent=1 // pred_region
      %119 = vsyncadd [#allocation14], 0
      %s120 = sshll.u32 %s8, 4
      %s121 = int_to_ptr.hbm [resolvable:$true] %s120
      %s122 = sshll.u32 [#allocation13], 4
      %s123 = int_to_ptr.vmem [resolvable:$true] %s122
      %128 = dma.hbm_to_vmem [thread:$0]  %s121, 512, %s123, [#allocation14], 128, 128, 8
    $region37: #{_lambda_.1} parent=1 // pred_fallthru
      _
    // Predicated region
    $region38: #{_lambda_.1} parent=1 // pred_check
      _
    $region39: #{_lambda_.1} parent=1 // pred_check_branch
      %130 = sbr.rel (0) target = $region41
    $region40: #{_lambda_.1} parent=1 // pred_region
      %132 = vsyncadd [#allocation14], 0
      %s133 = sshll.u32 %s9, 4
      %s134 = int_to_ptr.hbm [resolvable:$true] %s133
      %s135 = sshll.u32 [#allocation15], 4
      %s136 = int_to_ptr.vmem [resolvable:$true] %s135
      %141 = dma.hbm_to_vmem [thread:$0]  %s134, 512, %s136, [#allocation14], 128, 128, 8
    $region41: #{_lambda_.1} parent=1 // pred_fallthru
      _
    // Predicated region
    $region42: #{_lambda_.1} parent=1 // pred_check
      _
    $region43: #{_lambda_.1} parent=1 // pred_check_branch
      %143 = sbr.rel (0) target = $region45
    $region44: #{_lambda_.1} parent=1 // pred_region
      %145 = vsyncadd [#allocation17], 0
      %s146 = sshll.u32 %s10, 4
      %s147 = int_to_ptr.hbm [resolvable:$true] %s146
      %s148 = sshll.u32 [#allocation16], 4
      %s149 = int_to_ptr.vmem [resolvable:$true] %s148
      %154 = dma.hbm_to_vmem [thread:$0]  %s147, 512, %s149, [#allocation17], 128, 128, 8
    $region45: #{_lambda_.1} parent=1 // pred_fallthru
      _
    // Predicated region
    $region46: #{_lambda_.1} parent=1 // pred_check
      _
    $region47: #{_lambda_.1} parent=1 // pred_check_branch
      %156 = sbr.rel (0) target = $region49
    $region48: #{_lambda_.1} parent=1 // pred_region
      _
    $region49: #{_lambda_.1} parent=1 // pred_fallthru
      _
    // Predicated region
    $region50: #{_lambda_.1} parent=1 // pred_check
      _
    $region51: #{_lambda_.1} parent=1 // pred_check_branch
      %158 = sbr.rel (0) target = $region53
    $region52: #{_lambda_.1} parent=1 // pred_region
      _
    $region53: #{_lambda_.1} parent=1 // pred_fallthru
      _
    // Predicated region
    $region54: #{_lambda_.1} parent=1 // pred_check
      _
    $region55: #{_lambda_.1} parent=1 // pred_check_branch
      %160 = sbr.rel (0) target = $region57
    $region56: #{_lambda_.1} parent=1 // pred_region
      _
    $region57: #{_lambda_.1} parent=1 // pred_fallthru
      _
    // Predicated region
    $region58: #{_lambda_.1} parent=1 // pred_check
      _
    $region59: #{_lambda_.1} parent=1 // pred_check_branch
      %162 = sbr.rel (0) target = $region61
    $region60: #{_lambda_.1} parent=1 // pred_region
      %164 = dma.done [#allocation3], 1024
    $region61: #{_lambda_.1} parent=1 // pred_fallthru
      _
    // Predicated region
    $region62: #{_lambda_.1} parent=1 // pred_check
      _
    $region63: #{_lambda_.1} parent=1 // pred_check_branch
      %166 = sbr.rel (0) target = $region65
    $region64: #{_lambda_.1} parent=1 // pred_region
      %168 = dma.done [#allocation5], 1024
    $region65: #{_lambda_.1} parent=1 // pred_fallthru
      _
    // Predicated region
    $region66: #{_lambda_.1} parent=1 // pred_check
      _
    $region67: #{_lambda_.1} parent=1 // pred_check_branch
      %170 = sbr.rel (0) target = $region69
    $region68: #{_lambda_.1} parent=1 // pred_region
      %172 = dma.done [#allocation5], 32
    $region69: #{_lambda_.1} parent=1 // pred_fallthru
      _
    // Predicated region
    $region70: #{_lambda_.1} parent=1 // pred_check
      _
    $region71: #{_lambda_.1} parent=1 // pred_check_branch
      %174 = sbr.rel (0) target = $region73
    $region72: #{_lambda_.1} parent=1 // pred_region
      %176 = dma.done [#allocation8], 256
    $region73: #{_lambda_.1} parent=1 // pred_fallthru
      _
    // Predicated region
    $region74: #{_lambda_.1} parent=1 // pred_check
      _
    $region75: #{_lambda_.1} parent=1 // pred_check_branch
      %178 = sbr.rel (0) target = $region77
    $region76: #{_lambda_.1} parent=1 // pred_region
      %180 = dma.done [#allocation8], 512
    $region77: #{_lambda_.1} parent=1 // pred_fallthru
      _
    // Predicated region
    $region78: #{_lambda_.1} parent=1 // pred_check
      _
    $region79: #{_lambda_.1} parent=1 // pred_check_branch
      %182 = sbr.rel (0) target = $region81
    $region80: #{_lambda_.1} parent=1 // pred_region
      %184 = dma.done [#allocation11], 512
    $region81: #{_lambda_.1} parent=1 // pred_fallthru
      _
    // Predicated region
    $region82: #{_lambda_.1} parent=1 // pred_check
      _
    $region83: #{_lambda_.1} parent=1 // pred_check_branch
      %186 = sbr.rel (0) target = $region85
    $region84: #{_lambda_.1} parent=1 // pred_region
      %188 = dma.done [#allocation11], 1152
    $region85: #{_lambda_.1} parent=1 // pred_fallthru
      _
    // Predicated region
    $region86: #{_lambda_.1} parent=1 // pred_check
      _
    $region87: #{_lambda_.1} parent=1 // pred_check_branch
      %190 = sbr.rel (0) target = $region89
    $region88: #{_lambda_.1} parent=1 // pred_region
      %192 = dma.done [#allocation14], 512
    $region89: #{_lambda_.1} parent=1 // pred_fallthru
      _
    // Predicated region
    $region90: #{_lambda_.1} parent=1 // pred_check
      _
    $region91: #{_lambda_.1} parent=1 // pred_check_branch
      %194 = sbr.rel (0) target = $region93
    $region92: #{_lambda_.1} parent=1 // pred_region
      %196 = dma.done [#allocation14], 512
    $region93: #{_lambda_.1} parent=1 // pred_fallthru
      _
    // Predicated region
    $region94: #{_lambda_.1} parent=1 // pred_check
      _
    $region95: #{_lambda_.1} parent=1 // pred_check_branch
      %198 = sbr.rel (0) target = $region97
    $region96: #{_lambda_.1} parent=1 // pred_region
      %200 = dma.done [#allocation17], 512
    $region97: #{_lambda_.1} parent=1 // pred_fallthru
      _
    %v202 = vld [vmem:[%s0] sm:$0xf]
    %v203 = vld [vmem:[%s0 + $0x4] sm:$0xf]
    %v204 = vld [vmem:[%s0 + $0x8] sm:$0xf]
    %v205 = vld [vmem:[%s0 + $0xc] sm:$0xf]
    %v206 = vld [vmem:[#allocation2] sm:$0xff]
    %v207 = vld [vmem:[#allocation2 + $0x8] sm:$0xff]
    %v208 = vld [vmem:[#allocation2 + $0x10] sm:$0xff]
    %v209 = vld [vmem:[#allocation2 + $0x18] sm:$0xff]
    %v210 = vld [vmem:[#allocation2 + $0x20] sm:$0xff]
    %v211 = vld [vmem:[#allocation2 + $0x28] sm:$0xff]
    %v212 = vld [vmem:[#allocation2 + $0x30] sm:$0xff]
    %v213 = vld [vmem:[#allocation2 + $0x38] sm:$0xff]
    %v214 = vld [vmem:[#allocation6] sm:$0x3]
    %v216 = vperm.slane %v214, 0
    %v217 = vperm.slane %v214, 1
    %v224 = vunpack.c.l.b16 %v202
    %v225 = vunpack.c.l.b16 %v203
    %v226 = vunpack.c.l.b16 %v204
    %v227 = vunpack.c.l.b16 %v205
    %v228 = vpack.c.b16 %v225, %v224
    %v229 = vpack.c.b16 %v227, %v226
    %v238 = vunpack.c.l.b16 %v206
    %v239 = vunpack.c.h.b16 %v206
    %v240 = vunpack.c.l.b16 %v207
    %v241 = vunpack.c.h.b16 %v207
    %v242 = vunpack.c.l.b16 %v208
    %v243 = vunpack.c.h.b16 %v208
    %v244 = vunpack.c.l.b16 %v209
    %v245 = vunpack.c.h.b16 %v209
    %v246 = vunpack.c.l.b16 %v210
    %v247 = vunpack.c.h.b16 %v210
    %v248 = vunpack.c.l.b16 %v211
    %v249 = vunpack.c.h.b16 %v211
    %v250 = vunpack.c.l.b16 %v212
    %v251 = vunpack.c.h.b16 %v212
    %v252 = vunpack.c.l.b16 %v213
    %v253 = vunpack.c.h.b16 %v213
    %v254 = vpack.c.b16 %v240, %v238
    %v255 = vpack.c.b16 %v241, %v239
    %v256 = vpack.c.b16 %v244, %v242
    %v257 = vpack.c.b16 %v245, %v243
    %v258 = vpack.c.b16 %v248, %v246
    %v259 = vpack.c.b16 %v249, %v247
    %v260 = vpack.c.b16 %v252, %v250
    %v261 = vpack.c.b16 %v253, %v251
    %vm270 = vcmask 523264
    %v272 = vsel %vm270, %v228, 0
    %v275 = vsel %vm270, %v229, 0
    %277 = vmatpush.bf16.msra.mxu0 0
    %278 = vmatpush.bf16.msra.mxu0 0
    %279 = vmatpush.bf16.msra.mxu0 0
    %280 = vmatpush.bf16.msra.mxu0 0
    %281 = vmatpush.bf16.msra.mxu0 %v260
    %282 = vmatpush.bf16.msra.mxu0 %v258
    %283 = vmatpush.bf16.msra.mxu0 %v256
    %284 = vmatpush.bf16.msra.mxu0 %v254
    %285 = vmatmul.bf16.gmra.mxu0 %v272
    %v286 = vpop.f32.mrf.mxu0
    %v287 = vadd.f32 %v216, %v286
    %v288 = vpop.f32.mrf.mxu0
    %v289 = vadd.f32 %v216, %v288
    %290 = vmatmul.bf16.gmra.mxu0 %v275
    %v291 = vpop.f32.mrf.mxu0
    %v292 = vadd.f32 %v216, %v291
    %v293 = vpop.f32.mrf.mxu0
    %v294 = vadd.f32 %v216, %v293
    %295 = vdwg.mxu0
    %296 = vmatpush.bf16.msra.mxu0 0
    %297 = vmatpush.bf16.msra.mxu0 0
    %298 = vmatpush.bf16.msra.mxu0 0
    %299 = vmatpush.bf16.msra.mxu0 0
    %300 = vmatpush.bf16.msra.mxu0 %v261
    %301 = vmatpush.bf16.msra.mxu0 %v259
    %302 = vmatpush.bf16.msra.mxu0 %v257
    %303 = vmatpush.bf16.msra.mxu0 %v255
    %304 = vmatmul.bf16.gmra.mxu0 %v272
    %v305 = vpop.f32.mrf.mxu0
    %v306 = vadd.f32 %v217, %v305
    %v307 = vpop.f32.mrf.mxu0
    %v308 = vadd.f32 %v217, %v307
    %309 = vmatmul.bf16.gmra.mxu0 %v275
    %v310 = vpop.f32.mrf.mxu0
    %v311 = vadd.f32 %v217, %v310
    %v312 = vpop.f32.mrf.mxu0
    %v313 = vadd.f32 %v217, %v312
    %314 = vdwg.mxu0
    %v315 = vld [vmem:[#allocation4] sm:$0xff]
    %v316 = vld [vmem:[#allocation4 + $0x8] sm:$0xff]
    %v317 = vld [vmem:[#allocation4 + $0x10] sm:$0xff]
    %v318 = vld [vmem:[#allocation4 + $0x18] sm:$0xff]
    %v319 = vld [vmem:[#allocation4 + $0x20] sm:$0xff]
    %v320 = vld [vmem:[#allocation4 + $0x28] sm:$0xff]
    %v321 = vld [vmem:[#allocation4 + $0x30] sm:$0xff]
    %v322 = vld [vmem:[#allocation4 + $0x38] sm:$0xff]
    %v323 = vsub.f32 0.0, %v287
    %v324 = vsub.f32 0.0, %v306
    %v325 = vmul.f32 %v323, 1.442695
    %v326 = vpow.pop %v325
    %v327 = vmul.f32 %v324, 1.442695
    %v328 = vpow.pop %v327
    %v329 = vadd.f32 %v326, 1.0
    %v330 = vadd.f32 %v328, 1.0
    %v331 = vrcp.pop %v329
    %v332 = vrcp.pop %v330
    %v333 = vtanh.pop %v306
    %335 = vrot.lane.b32.xlu0 %v333, 64
    %v336 = vpop.permute.xlu0 %335
    %v338 = vmul.f32 %v331, %v336
    %v339 = vtanh.pop %v338
    %v340 = vmul.f32 %v332, %v339
    %v341 = vpack.c.bf16 %v340, %v340
    %v350 = vunpack.c.l.b16 %v315
    %v351 = vunpack.c.h.b16 %v315
    %v352 = vunpack.c.l.b16 %v316
    %v353 = vunpack.c.h.b16 %v316
    %v354 = vunpack.c.l.b16 %v317
    %v355 = vunpack.c.h.b16 %v317
    %v356 = vunpack.c.l.b16 %v318
    %v357 = vunpack.c.h.b16 %v318
    %v358 = vunpack.c.l.b16 %v319
    %v359 = vunpack.c.h.b16 %v319
    %v360 = vunpack.c.l.b16 %v320
    %v361 = vunpack.c.h.b16 %v320
    %v362 = vunpack.c.l.b16 %v321
    %v363 = vunpack.c.h.b16 %v321
    %v364 = vunpack.c.l.b16 %v322
    %v365 = vunpack.c.h.b16 %v322
    %v366 = vpack.c.b16 %v352, %v350
    %v367 = vpack.c.b16 %v353, %v351
    %v368 = vpack.c.b16 %v356, %v354
    %v369 = vpack.c.b16 %v357, %v355
    %v370 = vpack.c.b16 %v360, %v358
    %v371 = vpack.c.b16 %v361, %v359
    %v372 = vpack.c.b16 %v364, %v362
    %v373 = vpack.c.b16 %v365, %v363
    %v383 = vsel %vm270, %v341, 0
    %385 = vmatpush.bf16.msra.mxu0 0
    %386 = vmatpush.bf16.msra.mxu0 0
    %387 = vmatpush.bf16.msra.mxu0 0
    %388 = vmatpush.bf16.msra.mxu0 0
    %389 = vmatpush.bf16.msra.mxu0 %v372
    %390 = vmatpush.bf16.msra.mxu0 %v370
    %391 = vmatpush.bf16.msra.mxu0 %v368
    %392 = vmatpush.bf16.msra.mxu0 %v366
    %393 = vmatmul.bf16.gmra.mxu0 %v383
    %v394 = vpop.f32.mrf.mxu0
    %v395 = vadd.f32 0.0, %v394
    %v396 = vpop.f32.mrf.mxu0
    %397 = vdwg.mxu0
    %398 = vmatpush.bf16.msra.mxu0 0
    %399 = vmatpush.bf16.msra.mxu0 0
    %400 = vmatpush.bf16.msra.mxu0 0
    %401 = vmatpush.bf16.msra.mxu0 0
    %402 = vmatpush.bf16.msra.mxu0 %v373
    %403 = vmatpush.bf16.msra.mxu0 %v371
    %404 = vmatpush.bf16.msra.mxu0 %v369
    %405 = vmatpush.bf16.msra.mxu0 %v367
    %406 = vmatmul.bf16.gmra.mxu0 %v383
    %v407 = vpop.f32.mrf.mxu0
    %v408 = vadd.f32 0.0, %v407
    %v409 = vpop.f32.mrf.mxu0
    %410 = vdwg.mxu0
    %v411 = vadd.f32 %v289, %v395
    %v412 = vadd.f32 %v308, %v408
    %v413 = vsub.f32 0.0, %v411
    %v414 = vsub.f32 0.0, %v412
    %v415 = vmul.f32 %v413, 1.442695
    %v416 = vpow.pop %v415
    %v417 = vmul.f32 %v414, 1.442695
    %v418 = vpow.pop %v417
    %v419 = vadd.f32 %v416, 1.0
    %v420 = vadd.f32 %v418, 1.0
    %v421 = vrcp.pop %v419
    %v422 = vrcp.pop %v420
    %v423 = vtanh.pop %v412
    %425 = vrot.lane.b32.xlu0 %v338, 64
    %v426 = vpop.permute.xlu0 %425
    %v428 = vmul.f32 %v421, %v426
    %430 = vrot.lane.b32.xlu0 %v423, 64
    %v431 = vpop.permute.xlu0 %430
    %v433 = vmul.f32 %v421, %v431
    %435 = vrot.lane.b32.xlu0 %v433, 64
    %v436 = vpop.permute.xlu0 %435
    %v438 = vadd.f32 %v428, %v436
    %v439 = vtanh.pop %v438
    %441 = vrot.lane.b32.xlu0 %v439, 64
    %v442 = vpop.permute.xlu0 %441
    %v444 = vmul.f32 %v422, %v442
    %v445 = vpack.c.bf16 %v444, %v444
    %v447 = vsel %vm270, %v445, 0
    %449 = vmatpush.bf16.msra.mxu0 0
    %450 = vmatpush.bf16.msra.mxu0 0
    %451 = vmatpush.bf16.msra.mxu0 0
    %452 = vmatpush.bf16.msra.mxu0 0
    %453 = vmatpush.bf16.msra.mxu0 %v372
    %454 = vmatpush.bf16.msra.mxu0 %v370
    %455 = vmatpush.bf16.msra.mxu0 %v368
    %456 = vmatpush.bf16.msra.mxu0 %v366
    %457 = vmatmul.bf16.gmra.mxu0 %v447
    %v458 = vpop.f32.mrf.mxu0
    %v459 = vadd.f32 0.0, %v458
    %v460 = vpop.f32.mrf.mxu0
    %461 = vdwg.mxu0
    %462 = vmatpush.bf16.msra.mxu0 0
    %463 = vmatpush.bf16.msra.mxu0 0
    %464 = vmatpush.bf16.msra.mxu0 0
    %465 = vmatpush.bf16.msra.mxu0 0
    %466 = vmatpush.bf16.msra.mxu0 %v373
    %467 = vmatpush.bf16.msra.mxu0 %v371
    %468 = vmatpush.bf16.msra.mxu0 %v369
    %469 = vmatpush.bf16.msra.mxu0 %v367
    %470 = vmatmul.bf16.gmra.mxu0 %v447
    %v471 = vpop.f32.mrf.mxu0
    %v472 = vadd.f32 0.0, %v471
    %v473 = vpop.f32.mrf.mxu0
    %474 = vdwg.mxu0
    %v475 = vadd.f32 %v292, %v459
    %v476 = vadd.f32 %v311, %v472
    %v477 = vsub.f32 0.0, %v475
    %v478 = vsub.f32 0.0, %v476
    %v479 = vmul.f32 %v477, 1.442695
    %v480 = vpow.pop %v479
    %v481 = vmul.f32 %v478, 1.442695
    %v482 = vpow.pop %v481
    %v483 = vadd.f32 %v480, 1.0
    %v484 = vadd.f32 %v482, 1.0
    %v485 = vrcp.pop %v483
    %v486 = vrcp.pop %v484
    %v487 = vtanh.pop %v476
    %v488 = vmul.f32 %v485, %v438
    %490 = vrot.lane.b32.xlu0 %v487, 64
    %v491 = vpop.permute.xlu0 %490
    %v493 = vmul.f32 %v485, %v491
    %495 = vrot.lane.b32.xlu0 %v493, 64
    %v496 = vpop.permute.xlu0 %495
    %v498 = vadd.f32 %v488, %v496
    %v499 = vtanh.pop %v498
    %501 = vrot.lane.b32.xlu0 %v499, 64
    %v502 = vpop.permute.xlu0 %501
    %v504 = vmul.f32 %v486, %v502
    %v505 = vpack.c.bf16 %v504, %v504
    %v507 = vsel %vm270, %v505, 0
    %509 = vmatpush.bf16.msra.mxu0 0
    %510 = vmatpush.bf16.msra.mxu0 0
    %511 = vmatpush.bf16.msra.mxu0 0
    %512 = vmatpush.bf16.msra.mxu0 0
    %513 = vmatpush.bf16.msra.mxu0 %v372
    %514 = vmatpush.bf16.msra.mxu0 %v370
    %515 = vmatpush.bf16.msra.mxu0 %v368
    %516 = vmatpush.bf16.msra.mxu0 %v366
    %517 = vmatmul.bf16.gmra.mxu0 %v507
    %v518 = vpop.f32.mrf.mxu0
    %v519 = vadd.f32 0.0, %v518
    %v520 = vpop.f32.mrf.mxu0
    %521 = vdwg.mxu0
    %522 = vmatpush.bf16.msra.mxu0 0
    %523 = vmatpush.bf16.msra.mxu0 0
    %524 = vmatpush.bf16.msra.mxu0 0
    %525 = vmatpush.bf16.msra.mxu0 0
    %526 = vmatpush.bf16.msra.mxu0 %v373
    %527 = vmatpush.bf16.msra.mxu0 %v371
    %528 = vmatpush.bf16.msra.mxu0 %v369
    %529 = vmatpush.bf16.msra.mxu0 %v367
    %530 = vmatmul.bf16.gmra.mxu0 %v507
    %v531 = vpop.f32.mrf.mxu0
    %v532 = vadd.f32 0.0, %v531
    %v533 = vpop.f32.mrf.mxu0
    %534 = vdwg.mxu0
    %v535 = vadd.f32 %v294, %v519
    %v536 = vadd.f32 %v313, %v532
    %v537 = vsub.f32 0.0, %v535
    %v538 = vsub.f32 0.0, %v536
    %v539 = vmul.f32 %v537, 1.442695
    %v540 = vpow.pop %v539
    %v541 = vmul.f32 %v538, 1.442695
    %v542 = vpow.pop %v541
    %v543 = vadd.f32 %v540, 1.0
    %v544 = vadd.f32 %v542, 1.0
    %v545 = vrcp.pop %v543
    %v546 = vrcp.pop %v544
    %v547 = vtanh.pop %v536
    %v548 = vmul.f32 %v545, %v498
    %550 = vrot.lane.b32.xlu0 %v547, 64
    %v551 = vpop.permute.xlu0 %550
    %v553 = vmul.f32 %v545, %v551
    %555 = vrot.lane.b32.xlu0 %v553, 64
    %v556 = vpop.permute.xlu0 %555
    %v558 = vadd.f32 %v548, %v556
    %v559 = vtanh.pop %v558
    %561 = vrot.lane.b32.xlu0 %v559, 64
    %v562 = vpop.permute.xlu0 %561
    %v564 = vmul.f32 %v546, %v562
    %v565 = vsub.f32 0.0, %v340
    %v566 = vsub.f32 0.0, %v444
    %v567 = vsub.f32 0.0, %v504
    %v568 = vsub.f32 0.0, %v564
    %v569 = vmul.f32 %v565, 1.442695
    %v570 = vpow.pop %v569
    %v571 = vmul.f32 %v566, 1.442695
    %v572 = vpow.pop %v571
    %v573 = vmul.f32 %v567, 1.442695
    %v574 = vpow.pop %v573
    %v575 = vmul.f32 %v568, 1.442695
    %v576 = vpow.pop %v575
    %v577 = vadd.f32 %v570, 1.0
    %v578 = vadd.f32 %v572, 1.0
    %v579 = vadd.f32 %v574, 1.0
    %v580 = vadd.f32 %v576, 1.0
    %v581 = vrcp.pop %v577
    %v582 = vrcp.pop %v578
    %v583 = vrcp.pop %v579
    %v584 = vrcp.pop %v580
    %v585 = vld [vmem:[#allocation7] sm:$0xf]
    %v586 = vld [vmem:[#allocation7 + $0x4] sm:$0xf]
    %v587 = vld [vmem:[#allocation7 + $0x8] sm:$0xf]
    %v588 = vld [vmem:[#allocation7 + $0xc] sm:$0xf]
    %v589 = vpack.c.bf16 %v582, %v581
    %v590 = vpack.c.bf16 %v584, %v583
    %v595 = vunpack.c.l.b16 %v585
    %v596 = vunpack.c.l.b16 %v586
    %v597 = vunpack.c.l.b16 %v587
    %v598 = vunpack.c.l.b16 %v588
    %v599 = vpack.c.b16 %v596, %v595
    %v600 = vpack.c.b16 %v598, %v597
    %vm601 = vcmask 261120
    %v603 = vsel %vm601, %v599, 0
    %v606 = vsel %vm601, %v600, 0
    %608 = vmatpush.bf16.msra.mxu0 0
    %609 = vmatpush.bf16.msra.mxu0 0
    %610 = vmatpush.bf16.msra.mxu0 0
    %611 = vmatpush.bf16.msra.mxu0 0
    %612 = vmatpush.bf16.msra.mxu0 0
    %613 = vmatpush.bf16.msra.mxu0 0
    %614 = vmatpush.bf16.msra.mxu0 %v590
    %615 = vmatpush.bf16.msra.mxu0 %v589
    %616 = vmatmul.bf16.gmra.mxu0 %v603
    %v617 = vpop.f32.mrf.mxu0
    %v618 = vadd.f32 0.0, %v617
    %v619 = vpop.f32.mrf.mxu0
    %v620 = vadd.f32 0.0, %v619
    %621 = vmatmul.bf16.gmra.mxu0 %v606
    %v622 = vpop.f32.mrf.mxu0
    %v623 = vadd.f32 0.0, %v622
    %v624 = vpop.f32.mrf.mxu0
    %v625 = vadd.f32 0.0, %v624
    %626 = vdwg.mxu0
    %631 = vrot.lane.b32.xlu0 %v618, 8
    %v632 = vpop.permute.xlu0 %631
    %633 = vrot.lane.b32.xlu0 %v620, 8
    %v634 = vpop.permute.xlu0 %633
    %635 = vrot.lane.b32.xlu0 %v623, 8
    %v636 = vpop.permute.xlu0 %635
    %637 = vrot.lane.b32.xlu0 %v625, 8
    %v638 = vpop.permute.xlu0 %637
    %vm643 = vcmask 64512
    %v644 = vsel %vm643, 0.0, %v632
    %v645 = vsel %vm643, 0.0, %v634
    %v646 = vsel %vm643, 0.0, %v636
    %v647 = vsel %vm643, 0.0, %v638
    %vm648 = vcmask 588800
    %v649 = vsel %vm648, %v644, 0.0
    %v650 = vsel %vm648, %v645, 0.0
    %v651 = vsel %vm648, %v646, 0.0
    %v652 = vsel %vm648, %v647, 0.0
    %v653 = vld [vmem:[#allocation9] sm:$0xff]
    %v654 = vld [vmem:[#allocation9 + $0x8] sm:$0xff]
    %v655 = vld [vmem:[#allocation9 + $0x10] sm:$0xff]
    %v656 = vld [vmem:[#allocation9 + $0x18] sm:$0xff]
    %658 = vset.pattern.permute.xlu0 0
    %659 = vperm.xlu0 %658, %v653
    %v660 = vpop.permute.xlu0 %659
    %663 = vset.pattern.permute.xlu0 0
    %664 = vperm.xlu0 %663, %v654
    %v665 = vpop.permute.xlu0 %664
    %668 = vset.pattern.permute.xlu0 0
    %669 = vperm.xlu0 %668, %v655
    %v670 = vpop.permute.xlu0 %669
    %673 = vset.pattern.permute.xlu0 0
    %674 = vperm.xlu0 %673, %v656
    %v675 = vpop.permute.xlu0 %674
    %v677 = vmul.f32 %v660, %v649
    %v678 = vmul.f32 %v665, %v650
    %v679 = vmul.f32 %v670, %v651
    %v680 = vmul.f32 %v675, %v652
    %v681 = vadd.f32 %v677, 0.0
    %v682 = vadd.f32 %v678, 0.0
    %v683 = vadd.f32 %v679, 0.0
    %v684 = vadd.f32 %v680, 0.0
    %685 = vset.pattern.permute.xlu0 1
    %686 = vperm.xlu0 %685, %v653
    %v687 = vpop.permute.xlu0 %686
    %689 = vset.pattern.permute.xlu0 1
    %690 = vperm.xlu0 %689, %v654
    %v691 = vpop.permute.xlu0 %690
    %693 = vset.pattern.permute.xlu0 1
    %694 = vperm.xlu0 %693, %v655
    %v695 = vpop.permute.xlu0 %694
    %697 = vset.pattern.permute.xlu0 1
    %698 = vperm.xlu0 %697, %v656
    %v699 = vpop.permute.xlu0 %698
    %v701 = vmul.f32 %v687, %v649
    %v702 = vmul.f32 %v691, %v650
    %v703 = vmul.f32 %v695, %v651
    %v704 = vmul.f32 %v699, %v652
    %709 = vrot.lane.b32.xlu0 %v701, 127
    %v710 = vpop.permute.xlu0 %709
    %711 = vrot.lane.b32.xlu0 %v702, 127
    %v712 = vpop.permute.xlu0 %711
    %713 = vrot.lane.b32.xlu0 %v703, 127
    %v714 = vpop.permute.xlu0 %713
    %715 = vrot.lane.b32.xlu0 %v704, 127
    %v716 = vpop.permute.xlu0 %715
    %v721 = vadd.f32 %v681, %v710
    %v722 = vadd.f32 %v682, %v712
    %v723 = vadd.f32 %v683, %v714
    %v724 = vadd.f32 %v684, %v716
    %725 = vset.pattern.permute.xlu0 2
    %726 = vperm.xlu0 %725, %v653
    %v727 = vpop.permute.xlu0 %726
    %729 = vset.pattern.permute.xlu0 2
    %730 = vperm.xlu0 %729, %v654
    %v731 = vpop.permute.xlu0 %730
    %733 = vset.pattern.permute.xlu0 2
    %734 = vperm.xlu0 %733, %v655
    %v735 = vpop.permute.xlu0 %734
    %737 = vset.pattern.permute.xlu0 2
    %738 = vperm.xlu0 %737, %v656
    %v739 = vpop.permute.xlu0 %738
    %v741 = vmul.f32 %v727, %v649
    %v742 = vmul.f32 %v731, %v650
    %v743 = vmul.f32 %v735, %v651
    %v744 = vmul.f32 %v739, %v652
    %749 = vrot.lane.b32.xlu0 %v741, 126
    %v750 = vpop.permute.xlu0 %749
    %751 = vrot.lane.b32.xlu0 %v742, 126
    %v752 = vpop.permute.xlu0 %751
    %753 = vrot.lane.b32.xlu0 %v743, 126
    %v754 = vpop.permute.xlu0 %753
    %755 = vrot.lane.b32.xlu0 %v744, 126
    %v756 = vpop.permute.xlu0 %755
    %v761 = vadd.f32 %v721, %v750
    %v762 = vadd.f32 %v722, %v752
    %v763 = vadd.f32 %v723, %v754
    %v764 = vadd.f32 %v724, %v756
    %765 = vset.pattern.permute.xlu0 3
    %766 = vperm.xlu0 %765, %v653
    %v767 = vpop.permute.xlu0 %766
    %769 = vset.pattern.permute.xlu0 3
    %770 = vperm.xlu0 %769, %v654
    %v771 = vpop.permute.xlu0 %770
    %773 = vset.pattern.permute.xlu0 3
    %774 = vperm.xlu0 %773, %v655
    %v775 = vpop.permute.xlu0 %774
    %777 = vset.pattern.permute.xlu0 3
    %778 = vperm.xlu0 %777, %v656
    %v779 = vpop.permute.xlu0 %778
    %v781 = vmul.f32 %v767, %v649
    %v782 = vmul.f32 %v771, %v650
    %v783 = vmul.f32 %v775, %v651
    %v784 = vmul.f32 %v779, %v652
    %789 = vrot.lane.b32.xlu0 %v781, 125
    %v790 = vpop.permute.xlu0 %789
    %791 = vrot.lane.b32.xlu0 %v782, 125
    %v792 = vpop.permute.xlu0 %791
    %793 = vrot.lane.b32.xlu0 %v783, 125
    %v794 = vpop.permute.xlu0 %793
    %795 = vrot.lane.b32.xlu0 %v784, 125
    %v796 = vpop.permute.xlu0 %795
    %v801 = vadd.f32 %v761, %v790
    %v802 = vadd.f32 %v762, %v792
    %v803 = vadd.f32 %v763, %v794
    %v804 = vadd.f32 %v764, %v796
    %805 = vset.pattern.permute.xlu0 4
    %806 = vperm.xlu0 %805, %v653
    %v807 = vpop.permute.xlu0 %806
    %809 = vset.pattern.permute.xlu0 4
    %810 = vperm.xlu0 %809, %v654
    %v811 = vpop.permute.xlu0 %810
    %813 = vset.pattern.permute.xlu0 4
    %814 = vperm.xlu0 %813, %v655
    %v815 = vpop.permute.xlu0 %814
    %817 = vset.pattern.permute.xlu0 4
    %818 = vperm.xlu0 %817, %v656
    %v819 = vpop.permute.xlu0 %818
    %v821 = vmul.f32 %v807, %v649
    %v822 = vmul.f32 %v811, %v650
    %v823 = vmul.f32 %v815, %v651
    %v824 = vmul.f32 %v819, %v652
    %829 = vrot.lane.b32.xlu0 %v821, 124
    %v830 = vpop.permute.xlu0 %829
    %831 = vrot.lane.b32.xlu0 %v822, 124
    %v832 = vpop.permute.xlu0 %831
    %833 = vrot.lane.b32.xlu0 %v823, 124
    %v834 = vpop.permute.xlu0 %833
    %835 = vrot.lane.b32.xlu0 %v824, 124
    %v836 = vpop.permute.xlu0 %835
    %v841 = vadd.f32 %v801, %v830
    %v842 = vadd.f32 %v802, %v832
    %v843 = vadd.f32 %v803, %v834
    %v844 = vadd.f32 %v804, %v836
    %845 = vset.pattern.permute.xlu0 5
    %846 = vperm.xlu0 %845, %v653
    %v847 = vpop.permute.xlu0 %846
    %849 = vset.pattern.permute.xlu0 5
    %850 = vperm.xlu0 %849, %v654
    %v851 = vpop.permute.xlu0 %850
    %853 = vset.pattern.permute.xlu0 5
    %854 = vperm.xlu0 %853, %v655
    %v855 = vpop.permute.xlu0 %854
    %857 = vset.pattern.permute.xlu0 5
    %858 = vperm.xlu0 %857, %v656
    %v859 = vpop.permute.xlu0 %858
    %v861 = vmul.f32 %v847, %v649
    %v862 = vmul.f32 %v851, %v650
    %v863 = vmul.f32 %v855, %v651
    %v864 = vmul.f32 %v859, %v652
    %869 = vrot.lane.b32.xlu0 %v861, 123
    %v870 = vpop.permute.xlu0 %869
    %871 = vrot.lane.b32.xlu0 %v862, 123
    %v872 = vpop.permute.xlu0 %871
    %873 = vrot.lane.b32.xlu0 %v863, 123
    %v874 = vpop.permute.xlu0 %873
    %875 = vrot.lane.b32.xlu0 %v864, 123
    %v876 = vpop.permute.xlu0 %875
    %v881 = vadd.f32 %v841, %v870
    %v882 = vadd.f32 %v842, %v872
    %v883 = vadd.f32 %v843, %v874
    %v884 = vadd.f32 %v844, %v876
    %885 = vset.pattern.permute.xlu0 6
    %886 = vperm.xlu0 %885, %v653
    %v887 = vpop.permute.xlu0 %886
    %889 = vset.pattern.permute.xlu0 6
    %890 = vperm.xlu0 %889, %v654
    %v891 = vpop.permute.xlu0 %890
    %893 = vset.pattern.permute.xlu0 6
    %894 = vperm.xlu0 %893, %v655
    %v895 = vpop.permute.xlu0 %894
    %897 = vset.pattern.permute.xlu0 6
    %898 = vperm.xlu0 %897, %v656
    %v899 = vpop.permute.xlu0 %898
    %v901 = vmul.f32 %v887, %v649
    %v902 = vmul.f32 %v891, %v650
    %v903 = vmul.f32 %v895, %v651
    %v904 = vmul.f32 %v899, %v652
    %909 = vrot.lane.b32.xlu0 %v901, 122
    %v910 = vpop.permute.xlu0 %909
    %911 = vrot.lane.b32.xlu0 %v902, 122
    %v912 = vpop.permute.xlu0 %911
    %913 = vrot.lane.b32.xlu0 %v903, 122
    %v914 = vpop.permute.xlu0 %913
    %915 = vrot.lane.b32.xlu0 %v904, 122
    %v916 = vpop.permute.xlu0 %915
    %v921 = vadd.f32 %v881, %v910
    %v922 = vadd.f32 %v882, %v912
    %v923 = vadd.f32 %v883, %v914
    %v924 = vadd.f32 %v884, %v916
    %925 = vset.pattern.permute.xlu0 7
    %926 = vperm.xlu0 %925, %v653
    %v927 = vpop.permute.xlu0 %926
    %929 = vset.pattern.permute.xlu0 7
    %930 = vperm.xlu0 %929, %v654
    %v931 = vpop.permute.xlu0 %930
    %933 = vset.pattern.permute.xlu0 7
    %934 = vperm.xlu0 %933, %v655
    %v935 = vpop.permute.xlu0 %934
    %937 = vset.pattern.permute.xlu0 7
    %938 = vperm.xlu0 %937, %v656
    %v939 = vpop.permute.xlu0 %938
    %v941 = vmul.f32 %v927, %v649
    %v942 = vmul.f32 %v931, %v650
    %v943 = vmul.f32 %v935, %v651
    %v944 = vmul.f32 %v939, %v652
    %949 = vrot.lane.b32.xlu0 %v941, 121
    %v950 = vpop.permute.xlu0 %949
    %951 = vrot.lane.b32.xlu0 %v942, 121
    %v952 = vpop.permute.xlu0 %951
    %953 = vrot.lane.b32.xlu0 %v943, 121
    %v954 = vpop.permute.xlu0 %953
    %955 = vrot.lane.b32.xlu0 %v944, 121
    %v956 = vpop.permute.xlu0 %955
    %v961 = vadd.f32 %v921, %v950
    %v962 = vadd.f32 %v922, %v952
    %v963 = vadd.f32 %v923, %v954
    %v964 = vadd.f32 %v924, %v956
    %965 = vset.pattern.permute.xlu0 8
    %966 = vperm.xlu0 %965, %v653
    %v967 = vpop.permute.xlu0 %966
    %969 = vset.pattern.permute.xlu0 8
    %970 = vperm.xlu0 %969, %v654
    %v971 = vpop.permute.xlu0 %970
    %973 = vset.pattern.permute.xlu0 8
    %974 = vperm.xlu0 %973, %v655
    %v975 = vpop.permute.xlu0 %974
    %977 = vset.pattern.permute.xlu0 8
    %978 = vperm.xlu0 %977, %v656
    %v979 = vpop.permute.xlu0 %978
    %v981 = vmul.f32 %v967, %v649
    %v982 = vmul.f32 %v971, %v650
    %v983 = vmul.f32 %v975, %v651
    %v984 = vmul.f32 %v979, %v652
    %989 = vrot.lane.b32.xlu0 %v981, 120
    %v990 = vpop.permute.xlu0 %989
    %991 = vrot.lane.b32.xlu0 %v982, 120
    %v992 = vpop.permute.xlu0 %991
    %993 = vrot.lane.b32.xlu0 %v983, 120
    %v994 = vpop.permute.xlu0 %993
    %995 = vrot.lane.b32.xlu0 %v984, 120
    %v996 = vpop.permute.xlu0 %995
    %v1001 = vadd.f32 %v961, %v990
    %v1002 = vadd.f32 %v962, %v992
    %v1003 = vadd.f32 %v963, %v994
    %v1004 = vadd.f32 %v964, %v996
    %1005 = vset.pattern.permute.xlu0 9
    %1006 = vperm.xlu0 %1005, %v653
    %v1007 = vpop.permute.xlu0 %1006
    %1009 = vset.pattern.permute.xlu0 9
    %1010 = vperm.xlu0 %1009, %v654
    %v1011 = vpop.permute.xlu0 %1010
    %1013 = vset.pattern.permute.xlu0 9
    %1014 = vperm.xlu0 %1013, %v655
    %v1015 = vpop.permute.xlu0 %1014
    %1017 = vset.pattern.permute.xlu0 9
    %1018 = vperm.xlu0 %1017, %v656
    %v1019 = vpop.permute.xlu0 %1018
    %v1021 = vmul.f32 %v1007, %v649
    %v1022 = vmul.f32 %v1011, %v650
    %v1023 = vmul.f32 %v1015, %v651
    %v1024 = vmul.f32 %v1019, %v652
    %1029 = vrot.lane.b32.xlu0 %v1021, 119
    %v1030 = vpop.permute.xlu0 %1029
    %1031 = vrot.lane.b32.xlu0 %v1022, 119
    %v1032 = vpop.permute.xlu0 %1031
    %1033 = vrot.lane.b32.xlu0 %v1023, 119
    %v1034 = vpop.permute.xlu0 %1033
    %1035 = vrot.lane.b32.xlu0 %v1024, 119
    %v1036 = vpop.permute.xlu0 %1035
    %v1041 = vadd.f32 %v1001, %v1030
    %v1042 = vadd.f32 %v1002, %v1032
    %v1043 = vadd.f32 %v1003, %v1034
    %v1044 = vadd.f32 %v1004, %v1036
    %1045 = vset.pattern.permute.xlu0 10
    %1046 = vperm.xlu0 %1045, %v653
    %v1047 = vpop.permute.xlu0 %1046
    %1049 = vset.pattern.permute.xlu0 10
    %1050 = vperm.xlu0 %1049, %v654
    %v1051 = vpop.permute.xlu0 %1050
    %1053 = vset.pattern.permute.xlu0 10
    %1054 = vperm.xlu0 %1053, %v655
    %v1055 = vpop.permute.xlu0 %1054
    %1057 = vset.pattern.permute.xlu0 10
    %1058 = vperm.xlu0 %1057, %v656
    %v1059 = vpop.permute.xlu0 %1058
    %v1061 = vmul.f32 %v1047, %v649
    %v1062 = vmul.f32 %v1051, %v650
    %v1063 = vmul.f32 %v1055, %v651
    %v1064 = vmul.f32 %v1059, %v652
    %1069 = vrot.lane.b32.xlu0 %v1061, 118
    %v1070 = vpop.permute.xlu0 %1069
    %1071 = vrot.lane.b32.xlu0 %v1062, 118
    %v1072 = vpop.permute.xlu0 %1071
    %1073 = vrot.lane.b32.xlu0 %v1063, 118
    %v1074 = vpop.permute.xlu0 %1073
    %1075 = vrot.lane.b32.xlu0 %v1064, 118
    %v1076 = vpop.permute.xlu0 %1075
    %v1081 = vadd.f32 %v1041, %v1070
    %v1082 = vadd.f32 %v1042, %v1072
    %v1083 = vadd.f32 %v1043, %v1074
    %v1084 = vadd.f32 %v1044, %v1076
    %1085 = vset.pattern.permute.xlu0 11
    %1086 = vperm.xlu0 %1085, %v653
    %v1087 = vpop.permute.xlu0 %1086
    %1089 = vset.pattern.permute.xlu0 11
    %1090 = vperm.xlu0 %1089, %v654
    %v1091 = vpop.permute.xlu0 %1090
    %1093 = vset.pattern.permute.xlu0 11
    %1094 = vperm.xlu0 %1093, %v655
    %v1095 = vpop.permute.xlu0 %1094
    %1097 = vset.pattern.permute.xlu0 11
    %1098 = vperm.xlu0 %1097, %v656
    %v1099 = vpop.permute.xlu0 %1098
    %v1101 = vmul.f32 %v1087, %v649
    %v1102 = vmul.f32 %v1091, %v650
    %v1103 = vmul.f32 %v1095, %v651
    %v1104 = vmul.f32 %v1099, %v652
    %1109 = vrot.lane.b32.xlu0 %v1101, 117
    %v1110 = vpop.permute.xlu0 %1109
    %1111 = vrot.lane.b32.xlu0 %v1102, 117
    %v1112 = vpop.permute.xlu0 %1111
    %1113 = vrot.lane.b32.xlu0 %v1103, 117
    %v1114 = vpop.permute.xlu0 %1113
    %1115 = vrot.lane.b32.xlu0 %v1104, 117
    %v1116 = vpop.permute.xlu0 %1115
    %v1121 = vadd.f32 %v1081, %v1110
    %v1122 = vadd.f32 %v1082, %v1112
    %v1123 = vadd.f32 %v1083, %v1114
    %v1124 = vadd.f32 %v1084, %v1116
    %1125 = vset.pattern.permute.xlu0 12
    %1126 = vperm.xlu0 %1125, %v653
    %v1127 = vpop.permute.xlu0 %1126
    %1129 = vset.pattern.permute.xlu0 12
    %1130 = vperm.xlu0 %1129, %v654
    %v1131 = vpop.permute.xlu0 %1130
    %1133 = vset.pattern.permute.xlu0 12
    %1134 = vperm.xlu0 %1133, %v655
    %v1135 = vpop.permute.xlu0 %1134
    %1137 = vset.pattern.permute.xlu0 12
    %1138 = vperm.xlu0 %1137, %v656
    %v1139 = vpop.permute.xlu0 %1138
    %v1141 = vmul.f32 %v1127, %v649
    %v1142 = vmul.f32 %v1131, %v650
    %v1143 = vmul.f32 %v1135, %v651
    %v1144 = vmul.f32 %v1139, %v652
    %1149 = vrot.lane.b32.xlu0 %v1141, 116
    %v1150 = vpop.permute.xlu0 %1149
    %1151 = vrot.lane.b32.xlu0 %v1142, 116
    %v1152 = vpop.permute.xlu0 %1151
    %1153 = vrot.lane.b32.xlu0 %v1143, 116
    %v1154 = vpop.permute.xlu0 %1153
    %1155 = vrot.lane.b32.xlu0 %v1144, 116
    %v1156 = vpop.permute.xlu0 %1155
    %v1161 = vadd.f32 %v1121, %v1150
    %v1162 = vadd.f32 %v1122, %v1152
    %v1163 = vadd.f32 %v1123, %v1154
    %v1164 = vadd.f32 %v1124, %v1156
    %1165 = vset.pattern.permute.xlu0 13
    %1166 = vperm.xlu0 %1165, %v653
    %v1167 = vpop.permute.xlu0 %1166
    %1169 = vset.pattern.permute.xlu0 13
    %1170 = vperm.xlu0 %1169, %v654
    %v1171 = vpop.permute.xlu0 %1170
    %1173 = vset.pattern.permute.xlu0 13
    %1174 = vperm.xlu0 %1173, %v655
    %v1175 = vpop.permute.xlu0 %1174
    %1177 = vset.pattern.permute.xlu0 13
    %1178 = vperm.xlu0 %1177, %v656
    %v1179 = vpop.permute.xlu0 %1178
    %v1181 = vmul.f32 %v1167, %v649
    %v1182 = vmul.f32 %v1171, %v650
    %v1183 = vmul.f32 %v1175, %v651
    %v1184 = vmul.f32 %v1179, %v652
    %1189 = vrot.lane.b32.xlu0 %v1181, 115
    %v1190 = vpop.permute.xlu0 %1189
    %1191 = vrot.lane.b32.xlu0 %v1182, 115
    %v1192 = vpop.permute.xlu0 %1191
    %1193 = vrot.lane.b32.xlu0 %v1183, 115
    %v1194 = vpop.permute.xlu0 %1193
    %1195 = vrot.lane.b32.xlu0 %v1184, 115
    %v1196 = vpop.permute.xlu0 %1195
    %v1201 = vadd.f32 %v1161, %v1190
    %v1202 = vadd.f32 %v1162, %v1192
    %v1203 = vadd.f32 %v1163, %v1194
    %v1204 = vadd.f32 %v1164, %v1196
    %1205 = vset.pattern.permute.xlu0 14
    %1206 = vperm.xlu0 %1205, %v653
    %v1207 = vpop.permute.xlu0 %1206
    %1209 = vset.pattern.permute.xlu0 14
    %1210 = vperm.xlu0 %1209, %v654
    %v1211 = vpop.permute.xlu0 %1210
    %1213 = vset.pattern.permute.xlu0 14
    %1214 = vperm.xlu0 %1213, %v655
    %v1215 = vpop.permute.xlu0 %1214
    %1217 = vset.pattern.permute.xlu0 14
    %1218 = vperm.xlu0 %1217, %v656
    %v1219 = vpop.permute.xlu0 %1218
    %v1221 = vmul.f32 %v1207, %v649
    %v1222 = vmul.f32 %v1211, %v650
    %v1223 = vmul.f32 %v1215, %v651
    %v1224 = vmul.f32 %v1219, %v652
    %1229 = vrot.lane.b32.xlu0 %v1221, 114
    %v1230 = vpop.permute.xlu0 %1229
    %1231 = vrot.lane.b32.xlu0 %v1222, 114
    %v1232 = vpop.permute.xlu0 %1231
    %1233 = vrot.lane.b32.xlu0 %v1223, 114
    %v1234 = vpop.permute.xlu0 %1233
    %1235 = vrot.lane.b32.xlu0 %v1224, 114
    %v1236 = vpop.permute.xlu0 %1235
    %v1241 = vadd.f32 %v1201, %v1230
    %v1242 = vadd.f32 %v1202, %v1232
    %v1243 = vadd.f32 %v1203, %v1234
    %v1244 = vadd.f32 %v1204, %v1236
    %1245 = vset.pattern.permute.xlu0 15
    %1246 = vperm.xlu0 %1245, %v653
    %v1247 = vpop.permute.xlu0 %1246
    %1249 = vset.pattern.permute.xlu0 15
    %1250 = vperm.xlu0 %1249, %v654
    %v1251 = vpop.permute.xlu0 %1250
    %1253 = vset.pattern.permute.xlu0 15
    %1254 = vperm.xlu0 %1253, %v655
    %v1255 = vpop.permute.xlu0 %1254
    %1257 = vset.pattern.permute.xlu0 15
    %1258 = vperm.xlu0 %1257, %v656
    %v1259 = vpop.permute.xlu0 %1258
    %v1261 = vmul.f32 %v1247, %v649
    %v1262 = vmul.f32 %v1251, %v650
    %v1263 = vmul.f32 %v1255, %v651
    %v1264 = vmul.f32 %v1259, %v652
    %1269 = vrot.lane.b32.xlu0 %v1261, 113
    %v1270 = vpop.permute.xlu0 %1269
    %1271 = vrot.lane.b32.xlu0 %v1262, 113
    %v1272 = vpop.permute.xlu0 %1271
    %1273 = vrot.lane.b32.xlu0 %v1263, 113
    %v1274 = vpop.permute.xlu0 %1273
    %1275 = vrot.lane.b32.xlu0 %v1264, 113
    %v1276 = vpop.permute.xlu0 %1275
    %v1281 = vadd.f32 %v1241, %v1270
    %v1282 = vadd.f32 %v1242, %v1272
    %v1283 = vadd.f32 %v1243, %v1274
    %v1284 = vadd.f32 %v1244, %v1276
    %v1285 = vld [vmem:[#allocation10] sm:$0xff]
    %v1286 = vld [vmem:[#allocation10 + $0x8] sm:$0xff]
    %v1287 = vld [vmem:[#allocation10 + $0x10] sm:$0xff]
    %v1288 = vld [vmem:[#allocation10 + $0x18] sm:$0xff]
    %1290 = vset.pattern.permute.xlu0 0
    %1291 = vperm.xlu0 %1290, %v1285
    %v1292 = vpop.permute.xlu0 %1291
    %1295 = vset.pattern.permute.xlu0 0
    %1296 = vperm.xlu0 %1295, %v1286
    %v1297 = vpop.permute.xlu0 %1296
    %1300 = vset.pattern.permute.xlu0 0
    %1301 = vperm.xlu0 %1300, %v1287
    %v1302 = vpop.permute.xlu0 %1301
    %1305 = vset.pattern.permute.xlu0 0
    %1306 = vperm.xlu0 %1305, %v1288
    %v1307 = vpop.permute.xlu0 %1306
    %v1309 = vadd.f32 %v1281, %v1292
    %v1310 = vadd.f32 %v1282, %v1297
    %v1311 = vadd.f32 %v1283, %v1302
    %v1312 = vadd.f32 %v1284, %v1307
    %vm1313 = vcmp.gt.f32.partialorder %v1309, 0.0
    %vm1314 = vcmp.gt.f32.partialorder %v1310, 0.0
    %vm1315 = vcmp.gt.f32.partialorder %v1311, 0.0
    %vm1316 = vcmp.gt.f32.partialorder %v1312, 0.0
    %v1317 = vmin.f32 %v1309, 0.0
    %v1318 = vmin.f32 %v1310, 0.0
    %v1319 = vmin.f32 %v1311, 0.0
    %v1320 = vmin.f32 %v1312, 0.0
    %v1321 = vmul.f32 %v1317, 1.442695
    %v1322 = vpow.pop %v1321
    %v1323 = vmul.f32 %v1318, 1.442695
    %v1324 = vpow.pop %v1323
    %v1325 = vmul.f32 %v1319, 1.442695
    %v1326 = vpow.pop %v1325
    %v1327 = vmul.f32 %v1320, 1.442695
    %v1328 = vpow.pop %v1327
    %v1329 = vsub.f32 %v1322, 1.0
    %v1330 = vsub.f32 %v1324, 1.0
    %v1331 = vsub.f32 %v1326, 1.0
    %v1332 = vsub.f32 %v1328, 1.0
    %v1333 = vsel %vm1313, %v1309, %v1329
    %v1334 = vsel %vm1314, %v1310, %v1330
    %v1335 = vsel %vm1315, %v1311, %v1331
    %v1336 = vsel %vm1316, %v1312, %v1332
    %v1337 = vld [vmem:[#allocation12] sm:$0xff]
    %v1338 = vld [vmem:[#allocation12 + $0x8] sm:$0xff]
    %v1339 = vld [vmem:[#allocation12 + $0x10] sm:$0xff]
    %v1340 = vld [vmem:[#allocation12 + $0x18] sm:$0xff]
    %v1341 = vld [vmem:[#allocation12 + $0x20] sm:$0xff]
    %v1342 = vld [vmem:[#allocation12 + $0x28] sm:$0xff]
    %v1343 = vld [vmem:[#allocation12 + $0x30] sm:$0xff]
    %v1344 = vld [vmem:[#allocation12 + $0x38] sm:$0xff]
    %v1345 = vld [vmem:[#allocation12 + $0x40] sm:$0x1]
    %vm1346 = vcmask 531456
    %v1348 = vsel %vm1346, %v1333, 0
    %v1351 = vsel %vm1346, %v1334, 0
    %v1354 = vsel %vm1346, %v1335, 0
    %v1357 = vsel %vm1346, %v1336, 0
    %vm1359 = vcmask 1040384
    %v1361 = vsel %vm1359, %v1345, 0
    %1363 = vmatpush.msra.mxu0 0.0
    %1364 = vmatpush.msra.mxu0 0.0
    %1365 = vmatpush.msra.mxu0 0.0
    %1366 = vmatpush.msra.mxu0 0.0
    %1367 = vmatpush.msra.mxu0 0.0
    %1368 = vmatpush.msra.mxu0 0.0
    %1369 = vmatpush.msra.mxu0 0.0
    %1370 = vmatpush.msra.mxu0 %v1361
    %1371 = vmatpush.msra.mxu0 %v1344
    %1372 = vmatpush.msra.mxu0 %v1343
    %1373 = vmatpush.msra.mxu0 %v1342
    %1374 = vmatpush.msra.mxu0 %v1341
    %1375 = vmatpush.msra.mxu0 %v1340
    %1376 = vmatpush.msra.mxu0 %v1339
    %1377 = vmatpush.msra.mxu0 %v1338
    %1378 = vmatpush.msra.mxu0 %v1337
    %1379 = vmatmul.f32.gmra.mxu0 %v1348
    %v1380 = vpop.f32.mrf.mxu0
    %v1381 = vadd.f32 0.0, %v1380
    %1382 = vmatmul.f32.gmra.mxu0 %v1351
    %v1383 = vpop.f32.mrf.mxu0
    %v1384 = vadd.f32 0.0, %v1383
    %1385 = vmatmul.f32.gmra.mxu0 %v1354
    %v1386 = vpop.f32.mrf.mxu0
    %v1387 = vadd.f32 0.0, %v1386
    %1388 = vmatmul.f32.gmra.mxu0 %v1357
    %v1389 = vpop.f32.mrf.mxu0
    %v1390 = vadd.f32 0.0, %v1389
    %1391 = vdwg.mxu0
    %1396 = vrot.lane.b32.xlu0 %v1381, 4
    %v1397 = vpop.permute.xlu0 %1396
    %1398 = vrot.lane.b32.xlu0 %v1384, 4
    %v1399 = vpop.permute.xlu0 %1398
    %1400 = vrot.lane.b32.xlu0 %v1387, 4
    %v1401 = vpop.permute.xlu0 %1400
    %1402 = vrot.lane.b32.xlu0 %v1390, 4
    %v1403 = vpop.permute.xlu0 %1402
    %vm1408 = vcmask 31744
    %v1409 = vsel %vm1408, 0.0, %v1397
    %v1410 = vsel %vm1408, 0.0, %v1399
    %v1411 = vsel %vm1408, 0.0, %v1401
    %v1412 = vsel %vm1408, 0.0, %v1403
    %vm1413 = vcmask 162816
    %v1414 = vsel %vm1413, %v1409, 0.0
    %v1415 = vsel %vm1413, %v1410, 0.0
    %v1416 = vsel %vm1413, %v1411, 0.0
    %v1417 = vsel %vm1413, %v1412, 0.0
    %v1418 = vld [vmem:[#allocation13] sm:$0xff]
    %v1419 = vld [vmem:[#allocation13 + $0x8] sm:$0xff]
    %v1420 = vld [vmem:[#allocation13 + $0x10] sm:$0xff]
    %v1421 = vld [vmem:[#allocation13 + $0x18] sm:$0xff]
    %1423 = vset.pattern.permute.xlu0 0
    %1424 = vperm.xlu0 %1423, %v1418
    %v1425 = vpop.permute.xlu0 %1424
    %1428 = vset.pattern.permute.xlu0 0
    %1429 = vperm.xlu0 %1428, %v1419
    %v1430 = vpop.permute.xlu0 %1429
    %1433 = vset.pattern.permute.xlu0 0
    %1434 = vperm.xlu0 %1433, %v1420
    %v1435 = vpop.permute.xlu0 %1434
    %1438 = vset.pattern.permute.xlu0 0
    %1439 = vperm.xlu0 %1438, %v1421
    %v1440 = vpop.permute.xlu0 %1439
    %v1442 = vmul.f32 %v1425, %v1414
    %v1443 = vmul.f32 %v1430, %v1415
    %v1444 = vmul.f32 %v1435, %v1416
    %v1445 = vmul.f32 %v1440, %v1417
    %v1446 = vadd.f32 %v1442, 0.0
    %v1447 = vadd.f32 %v1443, 0.0
    %v1448 = vadd.f32 %v1444, 0.0
    %v1449 = vadd.f32 %v1445, 0.0
    %1450 = vset.pattern.permute.xlu0 1
    %1451 = vperm.xlu0 %1450, %v1418
    %v1452 = vpop.permute.xlu0 %1451
    %1454 = vset.pattern.permute.xlu0 1
    %1455 = vperm.xlu0 %1454, %v1419
    %v1456 = vpop.permute.xlu0 %1455
    %1458 = vset.pattern.permute.xlu0 1
    %1459 = vperm.xlu0 %1458, %v1420
    %v1460 = vpop.permute.xlu0 %1459
    %1462 = vset.pattern.permute.xlu0 1
    %1463 = vperm.xlu0 %1462, %v1421
    %v1464 = vpop.permute.xlu0 %1463
    %v1466 = vmul.f32 %v1452, %v1414
    %v1467 = vmul.f32 %v1456, %v1415
    %v1468 = vmul.f32 %v1460, %v1416
    %v1469 = vmul.f32 %v1464, %v1417
    %1474 = vrot.lane.b32.xlu0 %v1466, 127
    %v1475 = vpop.permute.xlu0 %1474
    %1476 = vrot.lane.b32.xlu0 %v1467, 127
    %v1477 = vpop.permute.xlu0 %1476
    %1478 = vrot.lane.b32.xlu0 %v1468, 127
    %v1479 = vpop.permute.xlu0 %1478
    %1480 = vrot.lane.b32.xlu0 %v1469, 127
    %v1481 = vpop.permute.xlu0 %1480
    %v1486 = vadd.f32 %v1446, %v1475
    %v1487 = vadd.f32 %v1447, %v1477
    %v1488 = vadd.f32 %v1448, %v1479
    %v1489 = vadd.f32 %v1449, %v1481
    %1490 = vset.pattern.permute.xlu0 2
    %1491 = vperm.xlu0 %1490, %v1418
    %v1492 = vpop.permute.xlu0 %1491
    %1494 = vset.pattern.permute.xlu0 2
    %1495 = vperm.xlu0 %1494, %v1419
    %v1496 = vpop.permute.xlu0 %1495
    %1498 = vset.pattern.permute.xlu0 2
    %1499 = vperm.xlu0 %1498, %v1420
    %v1500 = vpop.permute.xlu0 %1499
    %1502 = vset.pattern.permute.xlu0 2
    %1503 = vperm.xlu0 %1502, %v1421
    %v1504 = vpop.permute.xlu0 %1503
    %v1506 = vmul.f32 %v1492, %v1414
    %v1507 = vmul.f32 %v1496, %v1415
    %v1508 = vmul.f32 %v1500, %v1416
    %v1509 = vmul.f32 %v1504, %v1417
    %1514 = vrot.lane.b32.xlu0 %v1506, 126
    %v1515 = vpop.permute.xlu0 %1514
    %1516 = vrot.lane.b32.xlu0 %v1507, 126
    %v1517 = vpop.permute.xlu0 %1516
    %1518 = vrot.lane.b32.xlu0 %v1508, 126
    %v1519 = vpop.permute.xlu0 %1518
    %1520 = vrot.lane.b32.xlu0 %v1509, 126
    %v1521 = vpop.permute.xlu0 %1520
    %v1526 = vadd.f32 %v1486, %v1515
    %v1527 = vadd.f32 %v1487, %v1517
    %v1528 = vadd.f32 %v1488, %v1519
    %v1529 = vadd.f32 %v1489, %v1521
    %1530 = vset.pattern.permute.xlu0 3
    %1531 = vperm.xlu0 %1530, %v1418
    %v1532 = vpop.permute.xlu0 %1531
    %1534 = vset.pattern.permute.xlu0 3
    %1535 = vperm.xlu0 %1534, %v1419
    %v1536 = vpop.permute.xlu0 %1535
    %1538 = vset.pattern.permute.xlu0 3
    %1539 = vperm.xlu0 %1538, %v1420
    %v1540 = vpop.permute.xlu0 %1539
    %1542 = vset.pattern.permute.xlu0 3
    %1543 = vperm.xlu0 %1542, %v1421
    %v1544 = vpop.permute.xlu0 %1543
    %v1546 = vmul.f32 %v1532, %v1414
    %v1547 = vmul.f32 %v1536, %v1415
    %v1548 = vmul.f32 %v1540, %v1416
    %v1549 = vmul.f32 %v1544, %v1417
    %1554 = vrot.lane.b32.xlu0 %v1546, 125
    %v1555 = vpop.permute.xlu0 %1554
    %1556 = vrot.lane.b32.xlu0 %v1547, 125
    %v1557 = vpop.permute.xlu0 %1556
    %1558 = vrot.lane.b32.xlu0 %v1548, 125
    %v1559 = vpop.permute.xlu0 %1558
    %1560 = vrot.lane.b32.xlu0 %v1549, 125
    %v1561 = vpop.permute.xlu0 %1560
    %v1566 = vadd.f32 %v1526, %v1555
    %v1567 = vadd.f32 %v1527, %v1557
    %v1568 = vadd.f32 %v1528, %v1559
    %v1569 = vadd.f32 %v1529, %v1561
    %1570 = vset.pattern.permute.xlu0 4
    %1571 = vperm.xlu0 %1570, %v1418
    %v1572 = vpop.permute.xlu0 %1571
    %1574 = vset.pattern.permute.xlu0 4
    %1575 = vperm.xlu0 %1574, %v1419
    %v1576 = vpop.permute.xlu0 %1575
    %1578 = vset.pattern.permute.xlu0 4
    %1579 = vperm.xlu0 %1578, %v1420
    %v1580 = vpop.permute.xlu0 %1579
    %1582 = vset.pattern.permute.xlu0 4
    %1583 = vperm.xlu0 %1582, %v1421
    %v1584 = vpop.permute.xlu0 %1583
    %v1586 = vmul.f32 %v1572, %v1414
    %v1587 = vmul.f32 %v1576, %v1415
    %v1588 = vmul.f32 %v1580, %v1416
    %v1589 = vmul.f32 %v1584, %v1417
    %1594 = vrot.lane.b32.xlu0 %v1586, 124
    %v1595 = vpop.permute.xlu0 %1594
    %1596 = vrot.lane.b32.xlu0 %v1587, 124
    %v1597 = vpop.permute.xlu0 %1596
    %1598 = vrot.lane.b32.xlu0 %v1588, 124
    %v1599 = vpop.permute.xlu0 %1598
    %1600 = vrot.lane.b32.xlu0 %v1589, 124
    %v1601 = vpop.permute.xlu0 %1600
    %v1606 = vadd.f32 %v1566, %v1595
    %v1607 = vadd.f32 %v1567, %v1597
    %v1608 = vadd.f32 %v1568, %v1599
    %v1609 = vadd.f32 %v1569, %v1601
    %1610 = vset.pattern.permute.xlu0 5
    %1611 = vperm.xlu0 %1610, %v1418
    %v1612 = vpop.permute.xlu0 %1611
    %1614 = vset.pattern.permute.xlu0 5
    %1615 = vperm.xlu0 %1614, %v1419
    %v1616 = vpop.permute.xlu0 %1615
    %1618 = vset.pattern.permute.xlu0 5
    %1619 = vperm.xlu0 %1618, %v1420
    %v1620 = vpop.permute.xlu0 %1619
    %1622 = vset.pattern.permute.xlu0 5
    %1623 = vperm.xlu0 %1622, %v1421
    %v1624 = vpop.permute.xlu0 %1623
    %v1626 = vmul.f32 %v1612, %v1414
    %v1627 = vmul.f32 %v1616, %v1415
    %v1628 = vmul.f32 %v1620, %v1416
    %v1629 = vmul.f32 %v1624, %v1417
    %1634 = vrot.lane.b32.xlu0 %v1626, 123
    %v1635 = vpop.permute.xlu0 %1634
    %1636 = vrot.lane.b32.xlu0 %v1627, 123
    %v1637 = vpop.permute.xlu0 %1636
    %1638 = vrot.lane.b32.xlu0 %v1628, 123
    %v1639 = vpop.permute.xlu0 %1638
    %1640 = vrot.lane.b32.xlu0 %v1629, 123
    %v1641 = vpop.permute.xlu0 %1640
    %v1646 = vadd.f32 %v1606, %v1635
    %v1647 = vadd.f32 %v1607, %v1637
    %v1648 = vadd.f32 %v1608, %v1639
    %v1649 = vadd.f32 %v1609, %v1641
    %1650 = vset.pattern.permute.xlu0 6
    %1651 = vperm.xlu0 %1650, %v1418
    %v1652 = vpop.permute.xlu0 %1651
    %1654 = vset.pattern.permute.xlu0 6
    %1655 = vperm.xlu0 %1654, %v1419
    %v1656 = vpop.permute.xlu0 %1655
    %1658 = vset.pattern.permute.xlu0 6
    %1659 = vperm.xlu0 %1658, %v1420
    %v1660 = vpop.permute.xlu0 %1659
    %1662 = vset.pattern.permute.xlu0 6
    %1663 = vperm.xlu0 %1662, %v1421
    %v1664 = vpop.permute.xlu0 %1663
    %v1666 = vmul.f32 %v1652, %v1414
    %v1667 = vmul.f32 %v1656, %v1415
    %v1668 = vmul.f32 %v1660, %v1416
    %v1669 = vmul.f32 %v1664, %v1417
    %1674 = vrot.lane.b32.xlu0 %v1666, 122
    %v1675 = vpop.permute.xlu0 %1674
    %1676 = vrot.lane.b32.xlu0 %v1667, 122
    %v1677 = vpop.permute.xlu0 %1676
    %1678 = vrot.lane.b32.xlu0 %v1668, 122
    %v1679 = vpop.permute.xlu0 %1678
    %1680 = vrot.lane.b32.xlu0 %v1669, 122
    %v1681 = vpop.permute.xlu0 %1680
    %v1686 = vadd.f32 %v1646, %v1675
    %v1687 = vadd.f32 %v1647, %v1677
    %v1688 = vadd.f32 %v1648, %v1679
    %v1689 = vadd.f32 %v1649, %v1681
    %1690 = vset.pattern.permute.xlu0 7
    %1691 = vperm.xlu0 %1690, %v1418
    %v1692 = vpop.permute.xlu0 %1691
    %1694 = vset.pattern.permute.xlu0 7
    %1695 = vperm.xlu0 %1694, %v1419
    %v1696 = vpop.permute.xlu0 %1695
    %1698 = vset.pattern.permute.xlu0 7
    %1699 = vperm.xlu0 %1698, %v1420
    %v1700 = vpop.permute.xlu0 %1699
    %1702 = vset.pattern.permute.xlu0 7
    %1703 = vperm.xlu0 %1702, %v1421
    %v1704 = vpop.permute.xlu0 %1703
    %v1706 = vmul.f32 %v1692, %v1414
    %v1707 = vmul.f32 %v1696, %v1415
    %v1708 = vmul.f32 %v1700, %v1416
    %v1709 = vmul.f32 %v1704, %v1417
    %1714 = vrot.lane.b32.xlu0 %v1706, 121
    %v1715 = vpop.permute.xlu0 %1714
    %1716 = vrot.lane.b32.xlu0 %v1707, 121
    %v1717 = vpop.permute.xlu0 %1716
    %1718 = vrot.lane.b32.xlu0 %v1708, 121
    %v1719 = vpop.permute.xlu0 %1718
    %1720 = vrot.lane.b32.xlu0 %v1709, 121
    %v1721 = vpop.permute.xlu0 %1720
    %v1726 = vadd.f32 %v1686, %v1715
    %v1727 = vadd.f32 %v1687, %v1717
    %v1728 = vadd.f32 %v1688, %v1719
    %v1729 = vadd.f32 %v1689, %v1721
    %v1730 = vld [vmem:[#allocation15] sm:$0xff]
    %v1731 = vld [vmem:[#allocation15 + $0x8] sm:$0xff]
    %v1732 = vld [vmem:[#allocation15 + $0x10] sm:$0xff]
    %v1733 = vld [vmem:[#allocation15 + $0x18] sm:$0xff]
    %v1734 = vld [vmem:[#allocation16] sm:$0xff]
    %v1735 = vld [vmem:[#allocation16 + $0x8] sm:$0xff]
    %v1736 = vld [vmem:[#allocation16 + $0x10] sm:$0xff]
    %v1737 = vld [vmem:[#allocation16 + $0x18] sm:$0xff]
    %1739 = vset.pattern.permute.xlu0 0
    %1740 = vperm.xlu0 %1739, %v1734
    %v1741 = vpop.permute.xlu0 %1740
    %1744 = vset.pattern.permute.xlu0 0
    %1745 = vperm.xlu0 %1744, %v1735
    %v1746 = vpop.permute.xlu0 %1745
    %1749 = vset.pattern.permute.xlu0 0
    %1750 = vperm.xlu0 %1749, %v1736
    %v1751 = vpop.permute.xlu0 %1750
    %1754 = vset.pattern.permute.xlu0 0
    %1755 = vperm.xlu0 %1754, %v1737
    %v1756 = vpop.permute.xlu0 %1755
    %v1759 = vsel %vm601, %v1730, 0
    %v1762 = vsel %vm601, %v1731, 0
    %v1765 = vsel %vm601, %v1732, 0
    %v1768 = vsel %vm601, %v1733, 0
    %1770 = vmatpush.msra.mxu0 0.0
    %1771 = vmatpush.msra.mxu0 0.0
    %1772 = vmatpush.msra.mxu0 0.0
    %1773 = vmatpush.msra.mxu0 0.0
    %1774 = vmatpush.msra.mxu0 0.0
    %1775 = vmatpush.msra.mxu0 0.0
    %1776 = vmatpush.msra.mxu0 0.0
    %1777 = vmatpush.msra.mxu0 0.0
    %1778 = vmatpush.msra.mxu0 0.0
    %1779 = vmatpush.msra.mxu0 0.0
    %1780 = vmatpush.msra.mxu0 0.0
    %1781 = vmatpush.msra.mxu0 0.0
    %1782 = vmatpush.msra.mxu0 %v1729
    %1783 = vmatpush.msra.mxu0 %v1728
    %1784 = vmatpush.msra.mxu0 %v1727
    %1785 = vmatpush.msra.mxu0 %v1726
    %1786 = vmatmul.f32.gmra.mxu0 %v1759
    %v1787 = vpop.f32.mrf.mxu0
    %v1788 = vadd.f32 %v1741, %v1787
    %1789 = vmatmul.f32.gmra.mxu0 %v1762
    %v1790 = vpop.f32.mrf.mxu0
    %v1791 = vadd.f32 %v1746, %v1790
    %1792 = vmatmul.f32.gmra.mxu0 %v1765
    %v1793 = vpop.f32.mrf.mxu0
    %v1794 = vadd.f32 %v1751, %v1793
    %1795 = vmatmul.f32.gmra.mxu0 %v1768
    %v1796 = vpop.f32.mrf.mxu0
    %v1797 = vadd.f32 %v1756, %v1796
    %1798 = vdwg.mxu0
    %vm1799 = vcmp.gt.f32.partialorder %v1788, 0.0
    %vm1800 = vcmp.gt.f32.partialorder %v1791, 0.0
    %vm1801 = vcmp.gt.f32.partialorder %v1794, 0.0
    %vm1802 = vcmp.gt.f32.partialorder %v1797, 0.0
    %v1803 = vmin.f32 %v1788, 0.0
    %v1804 = vmin.f32 %v1791, 0.0
    %v1805 = vmin.f32 %v1794, 0.0
    %v1806 = vmin.f32 %v1797, 0.0
    %v1807 = vmul.f32 %v1803, 1.442695
    %v1808 = vpow.pop %v1807
    %v1809 = vmul.f32 %v1804, 1.442695
    %v1810 = vpow.pop %v1809
    %v1811 = vmul.f32 %v1805, 1.442695
    %v1812 = vpow.pop %v1811
    %v1813 = vmul.f32 %v1806, 1.442695
    %v1814 = vpow.pop %v1813
    %v1815 = vsub.f32 %v1808, 1.0
    %v1816 = vsub.f32 %v1810, 1.0
    %v1817 = vsub.f32 %v1812, 1.0
    %v1818 = vsub.f32 %v1814, 1.0
    %v1819 = vsel %vm1799, %v1788, %v1815
    %v1820 = vsel %vm1800, %v1791, %v1816
    %v1821 = vsel %vm1801, %v1794, %v1817
    %v1822 = vsel %vm1802, %v1797, %v1818
    %v1823 = vld [vmem:[%s11] sm:$0xff]
    %v1824 = vld [vmem:[%s11 + $0x8] sm:$0xff]
    %v1825 = vld [vmem:[%s11 + $0x10] sm:$0x1]
    %vm1826 = vcmask 138240
    %v1828 = vsel %vm1826, %v1819, 0
    %v1831 = vsel %vm1826, %v1820, 0
    %v1834 = vsel %vm1826, %v1821, 0
    %v1837 = vsel %vm1826, %v1822, 0
    %v1840 = vsel %vm1359, %v1825, 0
    %1842 = vmatpush.msra.mxu0 0.0
    %1843 = vmatpush.msra.mxu0 0.0
    %1844 = vmatpush.msra.mxu0 0.0
    %1845 = vmatpush.msra.mxu0 0.0
    %1846 = vmatpush.msra.mxu0 0.0
    %1847 = vmatpush.msra.mxu0 0.0
    %1848 = vmatpush.msra.mxu0 0.0
    %1849 = vmatpush.msra.mxu0 0.0
    %1850 = vmatpush.msra.mxu0 0.0
    %1851 = vmatpush.msra.mxu0 0.0
    %1852 = vmatpush.msra.mxu0 0.0
    %1853 = vmatpush.msra.mxu0 0.0
    %1854 = vmatpush.msra.mxu0 0.0
    %1855 = vmatpush.msra.mxu0 %v1840
    %1856 = vmatpush.msra.mxu0 %v1824
    %1857 = vmatpush.msra.mxu0 %v1823
    %1858 = vmatmul.f32.gmra.mxu0 %v1828
    %v1859 = vpop.f32.mrf.mxu0
    %v1860 = vadd.f32 0.0, %v1859
    %1861 = vmatmul.f32.gmra.mxu0 %v1831
    %v1862 = vpop.f32.mrf.mxu0
    %v1863 = vadd.f32 0.0, %v1862
    %1864 = vmatmul.f32.gmra.mxu0 %v1834
    %v1865 = vpop.f32.mrf.mxu0
    %v1866 = vadd.f32 0.0, %v1865
    %1867 = vmatmul.f32.gmra.mxu0 %v1837
    %v1868 = vpop.f32.mrf.mxu0
    %v1869 = vadd.f32 0.0, %v1868
    %1870 = vdwg.mxu0
    %v1871 = vld [vmem:[%s12] sm:$0xff]
    %v1872 = vld [vmem:[%s12 + $0x8] sm:$0xff]
    %v1873 = vld [vmem:[%s12 + $0x10] sm:$0xff]
    %v1874 = vld [vmem:[%s12 + $0x18] sm:$0xff]
    %1876 = vset.pattern.permute.xlu0 0
    %1877 = vperm.xlu0 %1876, %v1860
    %v1878 = vpop.permute.xlu0 %1877
    %1881 = vset.pattern.permute.xlu0 0
    %1882 = vperm.xlu0 %1881, %v1863
    %v1883 = vpop.permute.xlu0 %1882
    %1886 = vset.pattern.permute.xlu0 0
    %1887 = vperm.xlu0 %1886, %v1866
    %v1888 = vpop.permute.xlu0 %1887
    %1891 = vset.pattern.permute.xlu0 0
    %1892 = vperm.xlu0 %1891, %v1869
    %v1893 = vpop.permute.xlu0 %1892
    %v1895 = vmul.f32 %v1878, %v1871
    %v1896 = vmul.f32 %v1883, %v1872
    %v1897 = vmul.f32 %v1888, %v1873
    %v1898 = vmul.f32 %v1893, %v1874
    %v1899 = vadd.f32 %v1895, 0.0
    %v1900 = vadd.f32 %v1896, 0.0
    %v1901 = vadd.f32 %v1897, 0.0
    %v1902 = vadd.f32 %v1898, 0.0
    %1903 = vset.pattern.permute.xlu0 1
    %1904 = vperm.xlu0 %1903, %v1860
    %v1905 = vpop.permute.xlu0 %1904
    %1907 = vset.pattern.permute.xlu0 1
    %1908 = vperm.xlu0 %1907, %v1863
    %v1909 = vpop.permute.xlu0 %1908
    %1911 = vset.pattern.permute.xlu0 1
    %1912 = vperm.xlu0 %1911, %v1866
    %v1913 = vpop.permute.xlu0 %1912
    %1915 = vset.pattern.permute.xlu0 1
    %1916 = vperm.xlu0 %1915, %v1869
    %v1917 = vpop.permute.xlu0 %1916
    %v1919 = vmul.f32 %v1905, %v1871
    %v1920 = vmul.f32 %v1909, %v1872
    %v1921 = vmul.f32 %v1913, %v1873
    %v1922 = vmul.f32 %v1917, %v1874
    %1927 = vrot.lane.b32.xlu0 %v1919, 126
    %v1928 = vpop.permute.xlu0 %1927
    %1929 = vrot.lane.b32.xlu0 %v1920, 126
    %v1930 = vpop.permute.xlu0 %1929
    %1931 = vrot.lane.b32.xlu0 %v1921, 126
    %v1932 = vpop.permute.xlu0 %1931
    %1933 = vrot.lane.b32.xlu0 %v1922, 126
    %v1934 = vpop.permute.xlu0 %1933
    %v1939 = vadd.f32 %v1899, %v1928
    %v1940 = vadd.f32 %v1900, %v1930
    %v1941 = vadd.f32 %v1901, %v1932
    %v1942 = vadd.f32 %v1902, %v1934
    %v1943 = vld [vmem:[%s13] sm:$0xf]
    %v1945 = vsel %vm601, %v1943, 0
    %1947 = vmatpush.msra.mxu0 0.0
    %1948 = vmatpush.msra.mxu0 0.0
    %1949 = vmatpush.msra.mxu0 0.0
    %1950 = vmatpush.msra.mxu0 0.0
    %1951 = vmatpush.msra.mxu0 0.0
    %1952 = vmatpush.msra.mxu0 0.0
    %1953 = vmatpush.msra.mxu0 0.0
    %1954 = vmatpush.msra.mxu0 0.0
    %1955 = vmatpush.msra.mxu0 0.0
    %1956 = vmatpush.msra.mxu0 0.0
    %1957 = vmatpush.msra.mxu0 0.0
    %1958 = vmatpush.msra.mxu0 0.0
    %1959 = vmatpush.msra.mxu0 %v1942
    %1960 = vmatpush.msra.mxu0 %v1941
    %1961 = vmatpush.msra.mxu0 %v1940
    %1962 = vmatpush.msra.mxu0 %v1939
    %1963 = vmatmul.f32.gmra.mxu0 %v1945
    %v1964 = vpop.f32.mrf.mxu0
    %v1965 = vadd.f32 0.0, %v1964
    %1966 = vdwg.mxu0
    %vm1967 = vcmask 11264
    %1968 = vst.msk [vmem:[%s14] sm:$0xf] %vm1967, %v1965
    // Predicated region
    $region98: #{_lambda_.1} parent=1 // pred_check
      _
    $region99: #{_lambda_.1} parent=1 // pred_check_branch
      %1970 = sbr.rel (0) target = $region101
    $region100: #{_lambda_.1} parent=1 // pred_region
      _
    $region101: #{_lambda_.1} parent=1 // pred_fallthru
      _
    // Predicated region
    $region102: #{_lambda_.1} parent=1 // pred_check
      _
    $region103: #{_lambda_.1} parent=1 // pred_check_branch
      %1972 = sbr.rel (0) target = $region105
    $region104: #{_lambda_.1} parent=1 // pred_region
      _
    $region105: #{_lambda_.1} parent=1 // pred_fallthru
      _
    %1973 = vsyncpa [#allocation3], 1
    %1974 = vsyncpa [#allocation5], 1
    %1975 = vsyncpa [#allocation8], 1
    %1976 = vsyncpa [#allocation11], 1
    %1977 = vsyncpa [#allocation14], 1
    %1978 = vsyncpa [#allocation17], 1

</llo_original>
